<compile_context>
chip_gen: v5e
topology: v5e:2x2
jax: 0.10.0
libtpu: 0.0.40
codegen_flags: <defaults>
</compile_context>

<pallas_src>
import functools
import math

import numpy as np
import jax
import jax.numpy as jnp
from jax.experimental import pallas as pl
from jax.experimental.pallas import tpu as pltpu


# ---------------------------------------------------------------------------
# small helpers
# ---------------------------------------------------------------------------
def _round_up(n, m):
    return ((n + m - 1) // m) * m


def _pad_last(x, n):
    pad = n - x.shape[-1]
    if pad == 0:
        return x
    cfg = [(0, 0)] * (x.ndim - 1) + [(0, pad)]
    return jnp.pad(x, cfg)


def _pick_tile(n, target, quantum):
    """Largest multiple of `quantum` that divides n and is <= target, else n."""
    if n <= target:
        return n
    t = (target // quantum) * quantum
    while t >= quantum:
        if n % t == 0:
            return t
        t -= quantum
    return n


_VMEM_LIMIT = 48 * 1024 * 1024          # fits v5e/v6e/v7x scoped budgets
_K_TILE_TARGET = 512                     # k-space tile (lanes), multiple of 128
_X_TILE_TARGET = 128                     # image-row tile (sublanes), mult. of 8


# ---------------------------------------------------------------------------
# Pallas kernels
# ---------------------------------------------------------------------------
def _adj_kernel(kd_re_ref, kd_im_ref, d_re_ref, d_im_ref,
                ax_cos_ref, ax_sin_ref, by_cos_ref, by_sin_ref,
                s_re_ref, s_im_ref,
                out_re_ref, out_im_ref,
                acc_re_ref, acc_im_ref, *, C, NXT, inv_scale):
    """Adjoint NUDFT, one (frame, x-tile, k-tile) grid step; reduce over k."""
    k_step = pl.program_id(2)

    @pl.when(k_step == 0)
    def _():
        acc_re_ref[...] = jnp.zeros_like(acc_re_ref)
        acc_im_ref[...] = jnp.zeros_like(acc_im_ref)

    # density compensation (complex multiply, broadcast over coils)
    kd_re = kd_re_ref[...]                       # (C, Kt)
    kd_im = kd_im_ref[...]
    d_re = d_re_ref[...]                         # (1, Kt)
    d_im = d_im_ref[...]
    kdd_re = kd_re * d_re - kd_im * d_im
    kdd_im = kd_re * d_im + kd_im * d_re

    # stacked complex multiply with the separable x-factor Ax = exp(+i kx*ix):
    #   rows [0, C*NXT)        : Re(kdd[c,k] * Ax[ix,k])
    #   rows [C*NXT, 2*C*NXT)  : Im(kdd[c,k] * Ax[ix,k])
    axc = ax_cos_ref[...][None, :, :]            # (1, NXT, Kt)
    axs = ax_sin_ref[...][None, :, :]
    p = jnp.concatenate([kdd_re, kdd_im], axis=0)[:, None, :]    # (2C, 1, Kt)
    q = jnp.concatenate([-kdd_im, kdd_re], axis=0)[:, None, :]
    t_s = (p * axc + q * axs).reshape(2 * C * NXT, -1).astype(jnp.bfloat16)

    # two fused MXU matmuls against the separable y-factor exp(+i ky*iy)
    b_re = by_cos_ref[...].astype(jnp.bfloat16)  # (Kt, Ny)
    b_im = by_sin_ref[...].astype(jnp.bfloat16)
    m1 = jnp.dot(t_s, b_re, preferred_element_type=jnp.float32)  # (2*C*NXT, Ny)
    m2 = jnp.dot(t_s, b_im, preferred_element_type=jnp.float32)

    cn = C * NXT
    acc_re_ref[...] += m1[:cn] - m2[cn:]
    acc_im_ref[...] += m2[:cn] + m1[cn:]

    @pl.when(k_step == pl.num_programs(2) - 1)
    def _():
        y_re = acc_re_ref[...].reshape(C, NXT, -1)   # (C, NXT, Ny)
        y_im = acc_im_ref[...].reshape(C, NXT, -1)
        s_re = s_re_ref[...]                         # (C, NXT, Ny)
        s_im = s_im_ref[...]
        # coil combine with conj(smaps), sum over coils, scale by 1/sqrt(Nx*Ny)
        out_re_ref[...] = jnp.sum(s_re * y_re + s_im * y_im, axis=0) * inv_scale
        out_im_ref[...] = jnp.sum(s_re * y_im - s_im * y_re, axis=0) * inv_scale


def _fwd_kernel(img_re_ref, img_im_ref, fy_cos_ref, fy_sin_ref,
                fx_cos_ref, fx_sin_ref, s_re_ref, s_im_ref,
                kd_re_ref, kd_im_ref,
                acc_re_ref, acc_im_ref, *, C, NXT, inv_scale):
    """Forward NUDFT, one (frame, k-tile, x-tile) grid step; reduce over x."""
    x_step = pl.program_id(2)

    @pl.when(x_step == 0)
    def _():
        acc_re_ref[...] = jnp.zeros_like(acc_re_ref)
        acc_im_ref[...] = jnp.zeros_like(acc_im_ref)

    # coil images = smaps * image (complex multiply, broadcast over coils),
    # stacked [re ; im] along the streamed (sublane) dimension.
    ir = img_re_ref[...][None]                   # (1, NXT, Ny)
    ii = img_im_ref[...][None]
    s_re = s_re_ref[...]                         # (C, NXT, Ny)
    s_im = s_im_ref[...]
    c_re = s_re * ir - s_im * ii
    c_im = s_re * ii + s_im * ir
    c_s = (jnp.concatenate([c_re, c_im], axis=0)
           .reshape(2 * C * NXT, -1).astype(jnp.bfloat16))

    # two fused MXU matmuls contracting iy with exp(-i ky*iy) = cos - i sin
    fyc = fy_cos_ref[...].astype(jnp.bfloat16)   # (Ny, Kt)
    fys = fy_sin_ref[...].astype(jnp.bfloat16)
    m1 = jnp.dot(c_s, fyc, preferred_element_type=jnp.float32)   # (2*C*NXT, Kt)
    m2 = jnp.dot(c_s, fys, preferred_element_type=jnp.float32)
    cn = C * NXT
    u_re = (m1[:cn] + m2[cn:]).reshape(C, NXT, -1)   # (C, NXT, Kt)
    u_im = (m1[cn:] - m2[:cn]).reshape(C, NXT, -1)

    # multiply by exp(-i kx*ix) = cos - i sin and reduce over ix
    axc = fx_cos_ref[...][None]                  # (1, NXT, Kt)
    axs = fx_sin_ref[...][None]
    acc_re_ref[...] += jnp.sum(u_re * axc + u_im * axs, axis=1)  # (C, Kt)
    acc_im_ref[...] += jnp.sum(u_im * axc - u_re * axs, axis=1)

    @pl.when(x_step == pl.num_programs(2) - 1)
    def _():
        kd_re_ref[...] = acc_re_ref[...] * inv_scale
        kd_im_ref[...] = acc_im_ref[...] * inv_scale


# ---------------------------------------------------------------------------
# pallas_call wrappers (per-frame batched via the grid)
# ---------------------------------------------------------------------------
def _adjoint_nufft_frames(kd, dcomp, ktraj, smaps, Nx, Ny):
    # kd: (F, C, K) c64, dcomp: (F, K) c64, ktraj: (F, 2, K) f32,
    # smaps: (C, Nx, Ny) c64  ->  returns (F, Nx, Ny) c64
    F, C, K = kd.shape
    Kpad = _round_up(K, 128)

    kd_re = _pad_last(jnp.real(kd).astype(jnp.float32), Kpad)    # (F, C, Kpad)
    kd_im = _pad_last(jnp.imag(kd).astype(jnp.float32), Kpad)
    d_re = _pad_last(jnp.real(dcomp).astype(jnp.float32), Kpad)[:, None, :]
    d_im = _pad_last(jnp.imag(dcomp).astype(jnp.float32), Kpad)[:, None, :]

    kx = _pad_last(ktraj[:, 0, :].astype(jnp.float32), Kpad)     # (F, Kpad)
    ky = _pad_last(ktraj[:, 1, :].astype(jnp.float32), Kpad)
    ix = jnp.arange(Nx, dtype=jnp.float32)
    iy = jnp.arange(Ny, dtype=jnp.float32)
    # separable DFT factors (tiny: K*(Nx+Ny) per frame), phases kept in f32
    ax_ph = ix[None, :, None] * kx[:, None, :]                   # (F, Nx, Kpad)
    by_ph = ky[:, :, None] * iy[None, None, :]                   # (F, Kpad, Ny)
    ax_cos, ax_sin = jnp.cos(ax_ph), jnp.sin(ax_ph)
    by_cos, by_sin = jnp.cos(by_ph), jnp.sin(by_ph)

    s_re = jnp.real(smaps).astype(jnp.float32)                   # (C, Nx, Ny)
    s_im = jnp.imag(smaps).astype(jnp.float32)

    kt = _pick_tile(Kpad, _K_TILE_TARGET, 128)
    xt = _pick_tile(Nx, _X_TILE_TARGET, 8)
    grid = (F, Nx // xt, Kpad // kt)

    kernel = functools.partial(_adj_kernel, C=C, NXT=xt,
                               inv_scale=1.0 / math.sqrt(Nx * Ny))

    out_re, out_im = pl.pallas_call(
        kernel,
        grid=grid,
        in_specs=[
            pl.BlockSpec((None, C, kt), lambda f, x, k: (f, 0, k)),   # kd_re
            pl.BlockSpec((None, C, kt), lambda f, x, k: (f, 0, k)),   # kd_im
            pl.BlockSpec((None, 1, kt), lambda f, x, k: (f, 0, k)),   # d_re
            pl.BlockSpec((None, 1, kt), lambda f, x, k: (f, 0, k)),   # d_im
            pl.BlockSpec((None, xt, kt), lambda f, x, k: (f, x, k)),  # ax_cos
            pl.BlockSpec((None, xt, kt), lambda f, x, k: (f, x, k)),  # ax_sin
            pl.BlockSpec((None, kt, Ny), lambda f, x, k: (f, k, 0)),  # by_cos
            pl.BlockSpec((None, kt, Ny), lambda f, x, k: (f, k, 0)),  # by_sin
            pl.BlockSpec((C, xt, Ny), lambda f, x, k: (0, x, 0)),     # s_re
            pl.BlockSpec((C, xt, Ny), lambda f, x, k: (0, x, 0)),     # s_im
        ],
        out_specs=(pl.BlockSpec((None, xt, Ny), lambda f, x, k: (f, x, 0)),
                   pl.BlockSpec((None, xt, Ny), lambda f, x, k: (f, x, 0))),
        out_shape=(jax.ShapeDtypeStruct((F, Nx, Ny), jnp.float32),
                   jax.ShapeDtypeStruct((F, Nx, Ny), jnp.float32)),
        scratch_shapes=[pltpu.VMEM((C * xt, Ny), jnp.float32),
                        pltpu.VMEM((C * xt, Ny), jnp.float32)],
        compiler_params=pltpu.CompilerParams(
            dimension_semantics=("parallel", "parallel", "arbitrary"),
            vmem_limit_bytes=_VMEM_LIMIT),
    )(kd_re, kd_im, d_re, d_im, ax_cos, ax_sin, by_cos, by_sin, s_re, s_im)

    return (out_re + 1j * out_im).astype(jnp.complex64)          # (F, Nx, Ny)


def _forward_nufft_frames(img, ktraj, smaps, Nx, Ny):
    # img: (F, Nx, Ny) c64, ktraj: (F, 2, K) f32, smaps: (C, Nx, Ny) c64
    # -> returns (F, C, K) c64
    F = img.shape[0]
    C = smaps.shape[0]
    K = ktraj.shape[2]
    Kpad = _round_up(K, 128)

    im_re = jnp.real(img).astype(jnp.float32)                    # (F, Nx, Ny)
    im_im = jnp.imag(img).astype(jnp.float32)

    kx = _pad_last(ktraj[:, 0, :].astype(jnp.float32), Kpad)     # (F, Kpad)
    ky = _pad_last(ktraj[:, 1, :].astype(jnp.float32), Kpad)
    ix = jnp.arange(Nx, dtype=jnp.float32)
    iy = jnp.arange(Ny, dtype=jnp.float32)
    fx_ph = ix[None, :, None] * kx[:, None, :]                   # (F, Nx, Kpad)
    fy_ph = iy[None, :, None] * ky[:, None, :]                   # (F, Ny, Kpad)
    fx_cos, fx_sin = jnp.cos(fx_ph), jnp.sin(fx_ph)
    fy_cos, fy_sin = jnp.cos(fy_ph), jnp.sin(fy_ph)

    s_re = jnp.real(smaps).astype(jnp.float32)                   # (C, Nx, Ny)
    s_im = jnp.imag(smaps).astype(jnp.float32)

    kt = _pick_tile(Kpad, _K_TILE_TARGET, 128)
    xt = _pick_tile(Nx, _X_TILE_TARGET, 8)
    grid = (F, Kpad // kt, Nx // xt)

    kernel = functools.partial(_fwd_kernel, C=C, NXT=xt,
                               inv_scale=1.0 / math.sqrt(Nx * Ny))

    out_re, out_im = pl.pallas_call(
        kernel,
        grid=grid,
        in_specs=[
            pl.BlockSpec((None, xt, Ny), lambda f, k, x: (f, x, 0)),  # img_re
            pl.BlockSpec((None, xt, Ny), lambda f, k, x: (f, x, 0)),  # img_im
            pl.BlockSpec((None, Ny, kt), lambda f, k, x: (f, 0, k)),  # fy_cos
            pl.BlockSpec((None, Ny, kt), lambda f, k, x: (f, 0, k)),  # fy_sin
            pl.BlockSpec((None, xt, kt), lambda f, k, x: (f, x, k)),  # fx_cos
            pl.BlockSpec((None, xt, kt), lambda f, k, x: (f, x, k)),  # fx_sin
            pl.BlockSpec((C, xt, Ny), lambda f, k, x: (0, x, 0)),     # s_re
            pl.BlockSpec((C, xt, Ny), lambda f, k, x: (0, x, 0)),     # s_im
        ],
        out_specs=(pl.BlockSpec((None, C, kt), lambda f, k, x: (f, 0, k)),
                   pl.BlockSpec((None, C, kt), lambda f, k, x: (f, 0, k))),
        out_shape=(jax.ShapeDtypeStruct((F, C, Kpad), jnp.float32),
                   jax.ShapeDtypeStruct((F, C, Kpad), jnp.float32)),
        scratch_shapes=[pltpu.VMEM((C, kt), jnp.float32),
                        pltpu.VMEM((C, kt), jnp.float32)],
        compiler_params=pltpu.CompilerParams(
            dimension_semantics=("parallel", "parallel", "arbitrary"),
            vmem_limit_bytes=_VMEM_LIMIT),
    )(im_re, im_im, fy_cos, fy_sin, fx_cos, fx_sin, s_re, s_im)

    out = (out_re + 1j * out_im).astype(jnp.complex64)           # (F, C, Kpad)
    return out[:, :, :K]


# ---------------------------------------------------------------------------
# Module port
# ---------------------------------------------------------------------------
class MCNUFFT:
    """JAX/Pallas port of the torch MCNUFFT module (exact NUDFT operators)."""

    def __init__(self, ktraj, dcomp):
        self.ktraj = jnp.squeeze(ktraj)    # (2, K[, F]) float32
        self.dcomp = jnp.squeeze(dcomp)    # (K[, F]) complex64

    def __call__(self, inv, data, smaps):
        data = jnp.squeeze(data)
        Nx = smaps.shape[2]
        Ny = smaps.shape[3]
        smaps_c = smaps[0].astype(jnp.complex64)                # (C, Nx, Ny)
        if inv:
            if data.ndim > 2:
                kd = jnp.transpose(data, (2, 0, 1))             # (F, C, K)
                kt = jnp.transpose(self.ktraj, (2, 0, 1))       # (F, 2, K)
                dc = jnp.transpose(self.dcomp, (1, 0))          # (F, K)
                x = _adjoint_nufft_frames(kd, dc, kt, smaps_c, Nx, Ny)
                return jnp.transpose(x, (1, 2, 0))              # (Nx, Ny, F)
            kd = data[None]
            kt = self.ktraj[None]
            dc = self.dcomp[None]
            x = _adjoint_nufft_frames(kd, dc, kt, smaps_c, Nx, Ny)
            return x[0]                                         # (Nx, Ny)
        else:
            if data.ndim > 2:
                im = jnp.transpose(data, (2, 0, 1))             # (F, Nx, Ny)
                kt = jnp.transpose(self.ktraj, (2, 0, 1))
                x = _forward_nufft_frames(im, kt, smaps_c, Nx, Ny)
                return jnp.transpose(x, (1, 2, 0))              # (C, K, F)
            im = data[None]
            kt = self.ktraj[None]
            x = _forward_nufft_frames(im, kt, smaps_c, Nx, Ny)
            return x[0]                                         # (C, K)


# ---------------------------------------------------------------------------
# Pure-numpy reference (exact NUDFT, float64) for correctness check
# ---------------------------------------------------------------------------
def _ref_adjoint(kdata, ktraj, dcomp, smaps, Nx, Ny):
    C, K, F = kdata.shape
    P = Nx * Ny
    xg = np.repeat(np.arange(Nx), Ny).astype(np.float64)
    yg = np.tile(np.arange(Ny), Nx).astype(np.float64)
    out = np.zeros((Nx, Ny, F), dtype=np.complex128)
    for f in range(F):
        phase = (ktraj[0, :, f, None] * xg[None, :]
                 + ktraj[1, :, f, None] * yg[None, :])
        e = np.exp(1j * phase)                               # (K, P)
        y = (kdata[:, :, f] * dcomp[None, :, f]) @ e         # (C, P)
        img = np.sum(np.conj(smaps.reshape(C, P)) * y, axis=0)
        out[:, :, f] = img.reshape(Nx, Ny) / math.sqrt(Nx * Ny)
    return out


def _ref_forward(image, ktraj, smaps, Nx, Ny):
    C = smaps.shape[0]
    K = ktraj.shape[1]
    F = image.shape[2]
    P = Nx * Ny
    xg = np.repeat(np.arange(Nx), Ny).astype(np.float64)
    yg = np.tile(np.arange(Ny), Nx).astype(np.float64)
    out = np.zeros((C, K, F), dtype=np.complex128)
    for f in range(F):
        phase = (xg[:, None] * ktraj[0, None, :, f]
                 + yg[:, None] * ktraj[1, None, :, f])
        e = np.exp(-1j * phase)                              # (P, K)
        coil = smaps.reshape(C, P) * image[:, :, f].reshape(1, P)
        out[:, :, f] = (coil @ e) / math.sqrt(Nx * Ny)
    return out


if __name__ == "__main__":
    C, Nx, Ny, K, F = 8, 16, 16, 128, 2

    key = jax.random.PRNGKey(0)
    ks = jax.random.split(key, 8)
    smaps = (jax.random.normal(ks[0], (1, C, Nx, Ny))
             + 1j * jax.random.normal(ks[1], (1, C, Nx, Ny))).astype(jnp.complex64)
    ktraj = (jax.random.uniform(ks[2], (2, K, F), minval=-np.pi, maxval=np.pi)
             ).astype(jnp.float32)
    dcomp = (jax.random.uniform(ks[3], (K, F), minval=0.1, maxval=1.0)
             ).astype(jnp.complex64)
    kdata = (jax.random.normal(ks[4], (C, K, F))
             + 1j * jax.random.normal(ks[5], (C, K, F))).astype(jnp.complex64)
    image = (jax.random.normal(ks[6], (Nx, Ny, F))
             + 1j * jax.random.normal(ks[7], (Nx, Ny, F))).astype(jnp.complex64)

    op = MCNUFFT(ktraj, dcomp)

    # adjoint (inv=True): multi-frame k-space -> images (Nx, Ny, F)
    x_adj = jax.block_until_ready(op(True, kdata, smaps))
    assert x_adj.shape == (Nx, Ny, F) and x_adj.dtype == jnp.complex64

    # forward (inv=False): multi-frame images -> k-space (C, K, F)
    x_fwd = jax.block_until_ready(op(False, image, smaps))
    assert x_fwd.shape == (C, K, F) and x_fwd.dtype == jnp.complex64

    # single-frame paths
    x_adj1 = jax.block_until_ready(
        MCNUFFT(ktraj[:, :, 0], dcomp[:, 0])(True, kdata[:, :, 0], smaps))
    assert x_adj1.shape == (Nx, Ny)
    x_fwd1 = jax.block_until_ready(
        MCNUFFT(ktraj[:, :, 0], dcomp[:, 0])(False, image[:, :, 0], smaps))
    assert x_fwd1.shape == (C, K)

    # numerical check against float64 numpy reference of the exact NUDFT
    ref_adj = _ref_adjoint(np.asarray(kdata), np.asarray(ktraj),
                           np.asarray(dcomp), np.asarray(smaps[0]), Nx, Ny)
    ref_fwd = _ref_forward(np.asarray(image), np.asarray(ktraj),
                           np.asarray(smaps[0]), Nx, Ny)
    np.testing.assert_allclose(np.asarray(x_adj), ref_adj, rtol=5e-2, atol=5e-2)
    np.testing.assert_allclose(np.asarray(x_fwd), ref_fwd, rtol=5e-2, atol=5e-2)

    print("KERNEL_OK")
</pallas_src>

<mosaic_0001>
module attributes {stable_mosaic.version = 11 : i64} {
  func.func @_adj_kernel(%arg0: i32, %arg1: i32, %arg2: i32, %arg3: memref<1x8x128xf32, #tpu.memory_space<vmem>>, %arg4: memref<1x8x128xf32, #tpu.memory_space<vmem>>, %arg5: memref<1x1x128xf32, #tpu.memory_space<vmem>>, %arg6: memref<1x1x128xf32, #tpu.memory_space<vmem>>, %arg7: memref<1x16x128xf32, #tpu.memory_space<vmem>>, %arg8: memref<1x16x128xf32, #tpu.memory_space<vmem>>, %arg9: memref<1x128x16xf32, #tpu.memory_space<vmem>>, %arg10: memref<1x128x16xf32, #tpu.memory_space<vmem>>, %arg11: memref<8x16x16xf32, #tpu.memory_space<vmem>>, %arg12: memref<8x16x16xf32, #tpu.memory_space<vmem>>, %arg13: memref<1x16x16xf32, #tpu.memory_space<vmem>>, %arg14: memref<1x16x16xf32, #tpu.memory_space<vmem>>, %arg15: memref<128x16xf32, #tpu.memory_space<vmem>>, %arg16: memref<128x16xf32, #tpu.memory_space<vmem>>) attributes {dimension_semantics = [#tpu.dimension_semantics<parallel>, #tpu.dimension_semantics<parallel>, #tpu.dimension_semantics<arbitrary>], iteration_bounds = array<i64: 2, 1, 1>, scalar_prefetch = 0 : i64, scratch_operands = 2 : i64, tpu.core_type = #tpu.core_type<tc>, window_params = [{transform_indices = @transform_0, window_bounds = array<i64: 1, 8, 128>}, {transform_indices = @transform_1, window_bounds = array<i64: 1, 8, 128>}, {transform_indices = @transform_2, window_bounds = array<i64: 1, 1, 128>}, {transform_indices = @transform_3, window_bounds = array<i64: 1, 1, 128>}, {transform_indices = @transform_4, window_bounds = array<i64: 1, 16, 128>}, {transform_indices = @transform_5, window_bounds = array<i64: 1, 16, 128>}, {transform_indices = @transform_6, window_bounds = array<i64: 1, 128, 16>}, {transform_indices = @transform_7, window_bounds = array<i64: 1, 128, 16>}, {transform_indices = @transform_8, window_bounds = array<i64: 8, 16, 16>}, {transform_indices = @transform_9, window_bounds = array<i64: 8, 16, 16>}, {transform_indices = @transform_10, window_bounds = array<i64: 1, 16, 16>}, {transform_indices = @transform_11, window_bounds = array<i64: 1, 16, 16>}]} {
    %c0_i32 = arith.constant 0 : i32
    %0 = arith.cmpi eq, %arg2, %c0_i32 : i32
    %1 = arith.extui %0 : i1 to i32
    %c0_i32_0 = arith.constant 0 : i32
    %2 = arith.cmpi ne, %1, %c0_i32_0 : i32
    scf.if %2 {
      %cst_36 = arith.constant 0.000000e+00 : f32
      %65 = vector.broadcast %cst_36 : f32 to vector<128x16xf32>
      %c0_37 = arith.constant 0 : index
      %c0_38 = arith.constant 0 : index
      %66 = vector.load %arg15[%c0_37, %c0_38] : memref<128x16xf32, #tpu.memory_space<vmem>>, vector<128x16xf32>
      tpu.vector_store %arg15[%c0_37, %c0_38], %65 {strides = array<i32>} : memref<128x16xf32, #tpu.memory_space<vmem>>, vector<128x16xf32>,
      %cst_39 = arith.constant 0.000000e+00 : f32
      %67 = vector.broadcast %cst_39 : f32 to vector<128x16xf32>
      %c0_40 = arith.constant 0 : index
      %c0_41 = arith.constant 0 : index
      %68 = vector.load %arg16[%c0_40, %c0_41] : memref<128x16xf32, #tpu.memory_space<vmem>>, vector<128x16xf32>
      tpu.vector_store %arg16[%c0_40, %c0_41], %67 {strides = array<i32>} : memref<128x16xf32, #tpu.memory_space<vmem>>, vector<128x16xf32>,
    } else {
    }
    %c0 = arith.constant 0 : index
    %c0_1 = arith.constant 0 : index
    %c0_2 = arith.constant 0 : index
    %3 = vector.load %arg3[%c0, %c0_1, %c0_2] : memref<1x8x128xf32, #tpu.memory_space<vmem>>, vector<1x8x128xf32>
    %4 = vector.shape_cast %3 : vector<1x8x128xf32> to vector<8x128xf32>
    %c0_3 = arith.constant 0 : index
    %c0_4 = arith.constant 0 : index
    %c0_5 = arith.constant 0 : index
    %5 = vector.load %arg4[%c0_3, %c0_4, %c0_5] : memref<1x8x128xf32, #tpu.memory_space<vmem>>, vector<1x8x128xf32>
    %6 = vector.shape_cast %5 : vector<1x8x128xf32> to vector<8x128xf32>
    %c0_6 = arith.constant 0 : index
    %c0_7 = arith.constant 0 : index
    %c0_8 = arith.constant 0 : index
    %7 = vector.load %arg5[%c0_6, %c0_7, %c0_8] : memref<1x1x128xf32, #tpu.memory_space<vmem>>, vector<1x1x128xf32>
    %8 = vector.shape_cast %7 : vector<1x1x128xf32> to vector<1x128xf32>
    %c0_9 = arith.constant 0 : index
    %c0_10 = arith.constant 0 : index
    %c0_11 = arith.constant 0 : index
    %9 = vector.load %arg6[%c0_9, %c0_10, %c0_11] : memref<1x1x128xf32, #tpu.memory_space<vmem>>, vector<1x1x128xf32>
    %10 = vector.shape_cast %9 : vector<1x1x128xf32> to vector<1x128xf32>
    %11 = vector.broadcast %8 : vector<1x128xf32> to vector<8x128xf32>
    %12 = arith.mulf %4, %11 : vector<8x128xf32>
    %13 = vector.broadcast %10 : vector<1x128xf32> to vector<8x128xf32>
    %14 = arith.mulf %6, %13 : vector<8x128xf32>
    %15 = arith.subf %12, %14 : vector<8x128xf32>
    %16 = vector.broadcast %10 : vector<1x128xf32> to vector<8x128xf32>
    %17 = arith.mulf %4, %16 : vector<8x128xf32>
    %18 = vector.broadcast %8 : vector<1x128xf32> to vector<8x128xf32>
    %19 = arith.mulf %6, %18 : vector<8x128xf32>
    %20 = arith.addf %17, %19 : vector<8x128xf32>
    %c0_12 = arith.constant 0 : index
    %c0_13 = arith.constant 0 : index
    %c0_14 = arith.constant 0 : index
    %21 = vector.load %arg7[%c0_12, %c0_13, %c0_14] : memref<1x16x128xf32, #tpu.memory_space<vmem>>, vector<1x16x128xf32>
    %22 = vector.shape_cast %21 : vector<1x16x128xf32> to vector<16x128xf32>
    %23 = vector.shape_cast %22 : vector<16x128xf32> to vector<1x16x128xf32>
    %c0_15 = arith.constant 0 : index
    %c0_16 = arith.constant 0 : index
    %c0_17 = arith.constant 0 : index
    %24 = vector.load %arg8[%c0_15, %c0_16, %c0_17] : memref<1x16x128xf32, #tpu.memory_space<vmem>>, vector<1x16x128xf32>
    %25 = vector.shape_cast %24 : vector<1x16x128xf32> to vector<16x128xf32>
    %26 = vector.shape_cast %25 : vector<16x128xf32> to vector<1x16x128xf32>
    %27 = tpu.concatenate %15, %20 in 0 : vector<8x128xf32>, vector<8x128xf32> -> vector<16x128xf32>
    %28 = vector.shape_cast %27 : vector<16x128xf32> to vector<16x1x128xf32>
    %cst = arith.constant 0.000000e+00 : f32
    %29 = vector.broadcast %cst : f32 to vector<8x128xf32>
    %30 = arith.subf %29, %20 : vector<8x128xf32>
    %31 = tpu.concatenate %30, %15 in 0 : vector<8x128xf32>, vector<8x128xf32> -> vector<16x128xf32>
    %32 = vector.shape_cast %31 : vector<16x128xf32> to vector<16x1x128xf32>
    %33 = vector.broadcast %28 : vector<16x1x128xf32> to vector<16x16x128xf32>
    %34 = vector.broadcast %23 : vector<1x16x128xf32> to vector<16x16x128xf32>
    %35 = arith.mulf %33, %34 : vector<16x16x128xf32>
    %36 = vector.broadcast %32 : vector<16x1x128xf32> to vector<16x16x128xf32>
    %37 = vector.broadcast %26 : vector<1x16x128xf32> to vector<16x16x128xf32>
    %38 = arith.mulf %36, %37 : vector<16x16x128xf32>
    %39 = arith.addf %35, %38 : vector<16x16x128xf32>
    %40 = vector.shape_cast %39 : vector<16x16x128xf32> to vector<256x128xf32>
    %41 = arith.truncf %40 : vector<256x128xf32> to vector<256x128xbf16>
    %c0_18 = arith.constant 0 : index
    %c0_19 = arith.constant 0 : index
    %c0_20 = arith.constant 0 : index
    %42 = vector.load %arg9[%c0_18, %c0_19, %c0_20] : memref<1x128x16xf32, #tpu.memory_space<vmem>>, vector<1x128x16xf32>
    %43 = vector.shape_cast %42 : vector<1x128x16xf32> to vector<128x16xf32>
    %44 = arith.truncf %43 : vector<128x16xf32> to vector<128x16xbf16>
    %c0_21 = arith.constant 0 : index
    %c0_22 = arith.constant 0 : index
    %c0_23 = arith.constant 0 : index
    %45 = vector.load %arg10[%c0_21, %c0_22, %c0_23] : memref<1x128x16xf32, #tpu.memory_space<vmem>>, vector<1x128x16xf32>
    %46 = vector.shape_cast %45 : vector<1x128x16xf32> to vector<128x16xf32>
    %47 = arith.truncf %46 : vector<128x16xf32> to vector<128x16xbf16>
    %cst_24 = arith.constant dense<0.000000e+00> : vector<256x16xf32>
    %48 = tpu.matmul %41, %44, %cst_24 {dimension_numbers = #tpu.dot_dimension_numbers<[1], [0], [0], [1], [0, 0, 1, 1], [], []>} : vector<256x128xbf16>, vector<128x16xbf16>, vector<256x16xf32> -> vector<256x16xf32>
    %cst_25 = arith.constant dense<0.000000e+00> : vector<256x16xf32>
    %49 = tpu.matmul %41, %47, %cst_25 {dimension_numbers = #tpu.dot_dimension_numbers<[1], [0], [0], [1], [0, 0, 1, 1], [], []>} : vector<256x128xbf16>, vector<128x16xbf16>, vector<256x16xf32> -> vector<256x16xf32>
    %c0_26 = arith.constant 0 : index
    %c0_27 = arith.constant 0 : index
    %50 = vector.load %arg15[%c0_26, %c0_27] : memref<128x16xf32, #tpu.memory_space<vmem>>, vector<128x16xf32>
    %51 = vector.extract_strided_slice %48 {offsets = [0, 0], sizes = [128, 16], strides = [1, 1]} : vector<256x16xf32> to vector<128x16xf32>
    %52 = vector.extract_strided_slice %49 {offsets = [128, 0], sizes = [128, 16], strides = [1, 1]} : vector<256x16xf32> to vector<128x16xf32>
    %53 = arith.subf %51, %52 : vector<128x16xf32>
    %54 = arith.addf %50, %53 : vector<128x16xf32>
    %c0_28 = arith.constant 0 : index
    %c0_29 = arith.constant 0 : index
    %55 = vector.load %arg15[%c0_28, %c0_29] : memref<128x16xf32, #tpu.memory_space<vmem>>, vector<128x16xf32>
    tpu.vector_store %arg15[%c0_28, %c0_29], %54 {strides = array<i32>} : memref<128x16xf32, #tpu.memory_space<vmem>>, vector<128x16xf32>,
    %c0_30 = arith.constant 0 : index
    %c0_31 = arith.constant 0 : index
    %56 = vector.load %arg16[%c0_30, %c0_31] : memref<128x16xf32, #tpu.memory_space<vmem>>, vector<128x16xf32>
    %57 = vector.extract_strided_slice %49 {offsets = [0, 0], sizes = [128, 16], strides = [1, 1]} : vector<256x16xf32> to vector<128x16xf32>
    %58 = vector.extract_strided_slice %48 {offsets = [128, 0], sizes = [128, 16], strides = [1, 1]} : vector<256x16xf32> to vector<128x16xf32>
    %59 = arith.addf %57, %58 : vector<128x16xf32>
    %60 = arith.addf %56, %59 : vector<128x16xf32>
    %c0_32 = arith.constant 0 : index
    %c0_33 = arith.constant 0 : index
    %61 = vector.load %arg16[%c0_32, %c0_33] : memref<128x16xf32, #tpu.memory_space<vmem>>, vector<128x16xf32>
    tpu.vector_store %arg16[%c0_32, %c0_33], %60 {strides = array<i32>} : memref<128x16xf32, #tpu.memory_space<vmem>>, vector<128x16xf32>,
    %c0_i32_34 = arith.constant 0 : i32
    %62 = arith.cmpi eq, %arg2, %c0_i32_34 : i32
    %63 = arith.extui %62 : i1 to i32
    %c0_i32_35 = arith.constant 0 : i32
    %64 = arith.cmpi ne, %63, %c0_i32_35 : i32
    scf.if %64 {
      %c0_36 = arith.constant 0 : index
      %c0_37 = arith.constant 0 : index
      %65 = vector.load %arg15[%c0_36, %c0_37] : memref<128x16xf32, #tpu.memory_space<vmem>>, vector<128x16xf32>
      %66 = vector.shape_cast %65 : vector<128x16xf32> to vector<8x16x16xf32>
      %c0_38 = arith.constant 0 : index
      %c0_39 = arith.constant 0 : index
      %67 = vector.load %arg16[%c0_38, %c0_39] : memref<128x16xf32, #tpu.memory_space<vmem>>, vector<128x16xf32>
      %68 = vector.shape_cast %67 : vector<128x16xf32> to vector<8x16x16xf32>
      %c0_40 = arith.constant 0 : index
      %c0_41 = arith.constant 0 : index
      %c0_42 = arith.constant 0 : index
      %69 = vector.load %arg11[%c0_40, %c0_41, %c0_42] : memref<8x16x16xf32, #tpu.memory_space<vmem>>, vector<8x16x16xf32>
      %c0_43 = arith.constant 0 : index
      %c0_44 = arith.constant 0 : index
      %c0_45 = arith.constant 0 : index
      %70 = vector.load %arg12[%c0_43, %c0_44, %c0_45] : memref<8x16x16xf32, #tpu.memory_space<vmem>>, vector<8x16x16xf32>
      %71 = arith.mulf %69, %66 : vector<8x16x16xf32>
      %72 = arith.mulf %70, %68 : vector<8x16x16xf32>
      %73 = arith.addf %71, %72 : vector<8x16x16xf32>
      %cst_46 = arith.constant dense<0.000000e+00> : vector<16x16xf32>
      %74 = vector.multi_reduction <add>, %73, %cst_46 [0] : vector<8x16x16xf32> to vector<16x16xf32>
      %cst_47 = arith.constant 6.250000e-02 : f32
      %75 = vector.broadcast %cst_47 : f32 to vector<16x16xf32>
      %76 = arith.mulf %74, %75 : vector<16x16xf32>
      %c0_48 = arith.constant 0 : index
      %c0_49 = arith.constant 0 : index
      %c0_50 = arith.constant 0 : index
      %77 = vector.load %arg13[%c0_48, %c0_49, %c0_50] : memref<1x16x16xf32, #tpu.memory_space<vmem>>, vector<1x16x16xf32>
      %78 = vector.shape_cast %77 : vector<1x16x16xf32> to vector<16x16xf32>
      %79 = vector.shape_cast %76 : vector<16x16xf32> to vector<1x16x16xf32>
      tpu.vector_store %arg13[%c0_48, %c0_49, %c0_50], %79 {strides = array<i32>} : memref<1x16x16xf32, #tpu.memory_space<vmem>>, vector<1x16x16xf32>,
      %80 = arith.mulf %69, %68 : vector<8x16x16xf32>
      %81 = arith.mulf %70, %66 : vector<8x16x16xf32>
      %82 = arith.subf %80, %81 : vector<8x16x16xf32>
      %cst_51 = arith.constant dense<0.000000e+00> : vector<16x16xf32>
      %83 = vector.multi_reduction <add>, %82, %cst_51 [0] : vector<8x16x16xf32> to vector<16x16xf32>
      %cst_52 = arith.constant 6.250000e-02 : f32
      %84 = vector.broadcast %cst_52 : f32 to vector<16x16xf32>
      %85 = arith.mulf %83, %84 : vector<16x16xf32>
      %c0_53 = arith.constant 0 : index
      %c0_54 = arith.constant 0 : index
      %c0_55 = arith.constant 0 : index
      %86 = vector.load %arg14[%c0_53, %c0_54, %c0_55] : memref<1x16x16xf32, #tpu.memory_space<vmem>>, vector<1x16x16xf32>
      %87 = vector.shape_cast %86 : vector<1x16x16xf32> to vector<16x16xf32>
      %88 = vector.shape_cast %85 : vector<16x16xf32> to vector<1x16x16xf32>
      tpu.vector_store %arg14[%c0_53, %c0_54, %c0_55], %88 {strides = array<i32>} : memref<1x16x16xf32, #tpu.memory_space<vmem>>, vector<1x16x16xf32>,
    } else {
    }
    return
  }
  func.func @transform_0(%arg0: i32, %arg1: i32, %arg2: i32) -> (i32, i32, i32) {
    %c0_i32 = arith.constant 0 : i32
    %c0_i32_0 = arith.constant 0 : i32
    return %arg0, %c0_i32, %arg2 : i32, i32, i32
  }
  func.func @transform_1(%arg0: i32, %arg1: i32, %arg2: i32) -> (i32, i32, i32) {
    %c0_i32 = arith.constant 0 : i32
    %c0_i32_0 = arith.constant 0 : i32
    return %arg0, %c0_i32, %arg2 : i32, i32, i32
  }
  func.func @transform_2(%arg0: i32, %arg1: i32, %arg2: i32) -> (i32, i32, i32) {
    %c0_i32 = arith.constant 0 : i32
    %c0_i32_0 = arith.constant 0 : i32
    return %arg0, %c0_i32, %arg2 : i32, i32, i32
  }
  func.func @transform_3(%arg0: i32, %arg1: i32, %arg2: i32) -> (i32, i32, i32) {
    %c0_i32 = arith.constant 0 : i32
    %c0_i32_0 = arith.constant 0 : i32
    return %arg0, %c0_i32, %arg2 : i32, i32, i32
  }
  func.func @transform_4(%arg0: i32, %arg1: i32, %arg2: i32) -> (i32, i32, i32) {
    %c0_i32 = arith.constant 0 : i32
    return %arg0, %arg1, %arg2 : i32, i32, i32
  }
  func.func @transform_5(%arg0: i32, %arg1: i32, %arg2: i32) -> (i32, i32, i32) {
    %c0_i32 = arith.constant 0 : i32
    return %arg0, %arg1, %arg2 : i32, i32, i32
  }
  func.func @transform_6(%arg0: i32, %arg1: i32, %arg2: i32) -> (i32, i32, i32) {
    %c0_i32 = arith.constant 0 : i32
    %c0_i32_0 = arith.constant 0 : i32
    return %arg0, %arg2, %c0_i32 : i32, i32, i32
  }
  func.func @transform_7(%arg0: i32, %arg1: i32, %arg2: i32) -> (i32, i32, i32) {
    %c0_i32 = arith.constant 0 : i32
    %c0_i32_0 = arith.constant 0 : i32
    return %arg0, %arg2, %c0_i32 : i32, i32, i32
  }
  func.func @transform_8(%arg0: i32, %arg1: i32, %arg2: i32) -> (i32, i32, i32) {
    %c0_i32 = arith.constant 0 : i32
    %c0_i32_0 = arith.constant 0 : i32
    %c0_i32_1 = arith.constant 0 : i32
    return %c0_i32, %arg1, %c0_i32_0 : i32, i32, i32
  }
  func.func @transform_9(%arg0: i32, %arg1: i32, %arg2: i32) -> (i32, i32, i32) {
    %c0_i32 = arith.constant 0 : i32
    %c0_i32_0 = arith.constant 0 : i32
    %c0_i32_1 = arith.constant 0 : i32
    return %c0_i32, %arg1, %c0_i32_0 : i32, i32, i32
  }
  func.func @transform_10(%arg0: i32, %arg1: i32, %arg2: i32) -> (i32, i32, i32) {
    %c0_i32 = arith.constant 0 : i32
    %c0_i32_0 = arith.constant 0 : i32
    return %arg0, %arg1, %c0_i32 : i32, i32, i32
  }
  func.func @transform_11(%arg0: i32, %arg1: i32, %arg2: i32) -> (i32, i32, i32) {
    %c0_i32 = arith.constant 0 : i32
    %c0_i32_0 = arith.constant 0 : i32
    return %arg0, %arg1, %c0_i32 : i32, i32, i32
  }
}

</mosaic_0001>

<llo_original>
// kernel: tpu_custom_call.1
$region0: #{tpu_custom_call.1}
  #allocation0 [shape = 'u32[]', space=smem, size = 0x4, offset = 0x4, fixed_abs, tag = 'smem constant byte address 0x4 - core index']
  #allocation1 [shape = 'u32[72,128]{1,0:T(1,128)}', space=vmem, size = 0x9000, scoped, tag = 'internal scratch']
  #allocation2 [shape = 'f32[128,16]{1,0:T(8,128)}', space=vmem, size = 0x10000, scoped, tag = 'scratch operand']
  #allocation3 [shape = 'f32[128,16]{1,0:T(8,128)}', space=vmem, size = 0x10000, scoped, tag = 'scratch operand']
  %s0 = inlined_call_operand.vmem [shape: f32[2,8,128], index: 0, kind: input, shape index: {}]
  %s1 = inlined_call_operand.vmem [shape: f32[2,8,128], index: 1, kind: input, shape index: {}]
  %s2 = inlined_call_operand.vmem [shape: f32[2,1,128], index: 2, kind: input, shape index: {}]
  %s3 = inlined_call_operand.vmem [shape: f32[2,1,128], index: 3, kind: input, shape index: {}]
  %s4 = inlined_call_operand.vmem [shape: f32[2,16,128], index: 4, kind: input, shape index: {}]
  %s5 = inlined_call_operand.vmem [shape: f32[2,16,128], index: 5, kind: input, shape index: {}]
  %s6 = inlined_call_operand.vmem [shape: f32[2,128,16], index: 6, kind: input, shape index: {}]
  %s7 = inlined_call_operand.vmem [shape: f32[2,128,16], index: 7, kind: input, shape index: {}]
  %s8 = inlined_call_operand.vmem [shape: f32[8,16,16], index: 8, kind: input, shape index: {}]
  %s9 = inlined_call_operand.vmem [shape: f32[8,16,16], index: 9, kind: input, shape index: {}]
  %s10 = inlined_call_operand.hbm [shape: f32[2,16,16], index: 10, kind: output, shape index: {0}]
  %s11 = inlined_call_operand.hbm [shape: f32[2,16,16], index: 11, kind: output, shape index: {1}]
  %12 = xla_tuple %s10, %s11
  %s13 = sld [smem:[#allocation0]]
  $region89: #{tpu_custom_call.1} parent=0
    _
  %s15 = ssub.s32 1, %s13
  %s16 = scalar_select 0, %s15, %s13
  $region1: #{tpu_custom_call.1} parent=0
    #allocation4 [shape = 'u8[16384]{0}', space=vmem, size = 0x4000, scoped, tag = 'output window, operand 0']
    #allocation5 [shape = 's32[2]{0}', space=sflag, size = 0x8, scoped, tag = 'scoped memory for tpu_custom_call.1']
    #allocation6 [shape = 'u8[16384]{0}', space=vmem, size = 0x4000, scoped, tag = 'output window, operand 1']
    #allocation7 [shape = 's32[2]{0}', space=sflag, size = 0x8, scoped, tag = 'scoped memory for tpu_custom_call.1']
    %17 = vsyncpa [#allocation5], 0
    %s18 = scalar_lea.sflag [#allocation5], 1
    %19 = vsyncpa %s18, 0
    %20 = vsyncpa [#allocation7], 0
    %s21 = scalar_lea.sflag [#allocation7], 1
    %22 = vsyncpa %s21, 0
    loop: start=0, step=1, limit=4
    $region2: #{tpu_custom_call.1} parent=1 // loop_pre_header
      _
    $region3: #{tpu_custom_call.1} parent=1 // loop_header
      %s24 = sphi 0, %s28
      %p25 = scmp.ge.s32.totalorder %s24, 4
      %s31 = sphi 0, %s50
      %s32 = sphi 0, %s46
      %s33 = sphi 0, %s42
      %s34 = sphi 0, %s31
      %s35 = sphi 0, %s32
      %s36 = sphi 0, %s33
      %s37 = sphi 0, %s34
      %s38 = sphi 0, %s35
      %s39 = sphi 0, %s36
      %s55 = sphi 0, %s57
      %s58 = sphi 0, %s55
      %s59 = sphi 0, %s58
      %s75 = sphi 0, %s59
      %s83 = sphi 0, %s85
      %s86 = sphi 0, %s83
      %s87 = sphi 0, %s86
      %s103 = sphi 0, %s87
      %s111 = sphi 0, %s113
      %s114 = sphi 0, %s111
      %s115 = sphi 0, %s114
      %s131 = sphi 0, %s115
      %s139 = sphi 0, %s141
      %s142 = sphi 0, %s139
      %s143 = sphi 0, %s142
      %s159 = sphi 0, %s143
      %s169 = sphi 0, %s171
      %s172 = sphi 0, %s169
      %s173 = sphi 0, %s172
      %s189 = sphi 0, %s173
      %s199 = sphi 0, %s201
      %s202 = sphi 0, %s199
      %s203 = sphi 0, %s202
      %s219 = sphi 0, %s203
      %s227 = sphi 0, %s229
      %s230 = sphi 0, %s227
      %s231 = sphi 0, %s230
      %s247 = sphi 0, %s231
      %s255 = sphi 0, %s257
      %s258 = sphi 0, %s255
      %s259 = sphi 0, %s258
      %s275 = sphi 0, %s259
      %s281 = sphi 0, %s283
      %s284 = sphi 0, %s281
      %s285 = sphi 0, %s284
      %s301 = sphi 0, %s285
      %s307 = sphi 0, %s309
      %s310 = sphi 0, %s307
      %s311 = sphi 0, %s310
      %s327 = sphi 0, %s311
      %s335 = sphi 0, %s337
      %s338 = sphi 0, %s335
      %s339 = sphi 0, %s338
      %s355 = sphi 0, %s339
      %s363 = sphi 0, %s365
      %s366 = sphi 0, %s363
      %s367 = sphi 0, %s366
      %s383 = sphi 0, %s367
    $region4: #{tpu_custom_call.1} parent=1 // loop_header_branch
      %27 = sbr.rel (%p25) target = $region8
    $region5: #{tpu_custom_call.1} parent=1 // loop_body
      %s29 = ssub.s32 %s24, 1
      %s30 = ssub.s32 %s24, 2
      %s40 = sadd.s32 1, %s33
      %p41 = scmp.ge.s32.totalorder %s40, 1
      %s42 = scalar_select %p41, 0, %s40
      %s43 = sadd.s32 1, %s32
      %s44 = scalar_select %p41, %s43, %s32
      %p45 = scmp.ge.s32.totalorder %s44, 1
      %s46 = scalar_select %p45, 0, %s44
      %s47 = sadd.s32 1, %s31
      %s48 = scalar_select %p45, %s47, %s31
      %p49 = scmp.ge.s32.totalorder %s48, 2
      %s50 = scalar_select %p49, 0, %s48
      %s51 = ssub.s32 %s31, %s50
      %s52 = ssub.s32 %s33, %s42
      %s53 = sor.u32 %s51, %s52
      %p54 = scmp.eq.s32.totalorder %s53, 0
      %s56 = sadd.s32 %s55, 1
      %s57 = scalar_select %p54, %s55, %s56
      %p60 = pneg %p54
      %p61 = scmp.eq.s32.totalorder %s24, 1
      %p62 = por %p60, %p61
      %p63 = scmp.ne.s32.totalorder %s55, %s58
      %p64 = scmp.eq.s32.totalorder %s24, 0
      %p65 = por %p63, %p64
      %p66 = scmp.ne.s32.totalorder %s55, %s58
      %p67 = scmp.eq.s32.totalorder %s29, 1
      %p68 = por %p66, %p67
      %p69 = scmp.ne.s32.totalorder %s58, %s59
      %p70 = scmp.eq.s32.totalorder %s29, 0
      %p71 = por %p69, %p70
      %p72 = scmp.ne.s32.totalorder %s58, %s59
      %p73 = scmp.eq.s32.totalorder %s30, 1
      %p74 = por %p72, %p73
      %p76 = scmp.ne.s32.totalorder %s59, %s75
      %p77 = scmp.eq.s32.totalorder %s30, 0
      %p78 = por %p76, %p77
      %s79 = ssub.s32 %s31, %s50
      %s80 = ssub.s32 %s33, %s42
      %s81 = sor.u32 %s79, %s80
      %p82 = scmp.eq.s32.totalorder %s81, 0
      %s84 = sadd.s32 %s83, 1
      %s85 = scalar_select %p82, %s83, %s84
      %p88 = pneg %p82
      %p89 = scmp.eq.s32.totalorder %s24, 1
      %p90 = por %p88, %p89
      %p91 = scmp.ne.s32.totalorder %s83, %s86
      %p92 = scmp.eq.s32.totalorder %s24, 0
      %p93 = por %p91, %p92
      %p94 = scmp.ne.s32.totalorder %s83, %s86
      %p95 = scmp.eq.s32.totalorder %s29, 1
      %p96 = por %p94, %p95
      %p97 = scmp.ne.s32.totalorder %s86, %s87
      %p98 = scmp.eq.s32.totalorder %s29, 0
      %p99 = por %p97, %p98
      %p100 = scmp.ne.s32.totalorder %s86, %s87
      %p101 = scmp.eq.s32.totalorder %s30, 1
      %p102 = por %p100, %p101
      %p104 = scmp.ne.s32.totalorder %s87, %s103
      %p105 = scmp.eq.s32.totalorder %s30, 0
      %p106 = por %p104, %p105
      %s107 = ssub.s32 %s31, %s50
      %s108 = ssub.s32 %s33, %s42
      %s109 = sor.u32 %s107, %s108
      %p110 = scmp.eq.s32.totalorder %s109, 0
      %s112 = sadd.s32 %s111, 1
      %s113 = scalar_select %p110, %s111, %s112
      %p116 = pneg %p110
      %p117 = scmp.eq.s32.totalorder %s24, 1
      %p118 = por %p116, %p117
      %p119 = scmp.ne.s32.totalorder %s111, %s114
      %p120 = scmp.eq.s32.totalorder %s24, 0
      %p121 = por %p119, %p120
      %p122 = scmp.ne.s32.totalorder %s111, %s114
      %p123 = scmp.eq.s32.totalorder %s29, 1
      %p124 = por %p122, %p123
      %p125 = scmp.ne.s32.totalorder %s114, %s115
      %p126 = scmp.eq.s32.totalorder %s29, 0
      %p127 = por %p125, %p126
      %p128 = scmp.ne.s32.totalorder %s114, %s115
      %p129 = scmp.eq.s32.totalorder %s30, 1
      %p130 = por %p128, %p129
      %p132 = scmp.ne.s32.totalorder %s115, %s131
      %p133 = scmp.eq.s32.totalorder %s30, 0
      %p134 = por %p132, %p133
      %s135 = ssub.s32 %s31, %s50
      %s136 = ssub.s32 %s33, %s42
      %s137 = sor.u32 %s135, %s136
      %p138 = scmp.eq.s32.totalorder %s137, 0
      %s140 = sadd.s32 %s139, 1
      %s141 = scalar_select %p138, %s139, %s140
      %p144 = pneg %p138
      %p145 = scmp.eq.s32.totalorder %s24, 1
      %p146 = por %p144, %p145
      %p147 = scmp.ne.s32.totalorder %s139, %s142
      %p148 = scmp.eq.s32.totalorder %s24, 0
      %p149 = por %p147, %p148
      %p150 = scmp.ne.s32.totalorder %s139, %s142
      %p151 = scmp.eq.s32.totalorder %s29, 1
      %p152 = por %p150, %p151
      %p153 = scmp.ne.s32.totalorder %s142, %s143
      %p154 = scmp.eq.s32.totalorder %s29, 0
      %p155 = por %p153, %p154
      %p156 = scmp.ne.s32.totalorder %s142, %s143
      %p157 = scmp.eq.s32.totalorder %s30, 1
      %p158 = por %p156, %p157
      %p160 = scmp.ne.s32.totalorder %s143, %s159
      %p161 = scmp.eq.s32.totalorder %s30, 0
      %p162 = por %p160, %p161
      %s163 = ssub.s32 %s31, %s50
      %s164 = ssub.s32 %s32, %s46
      %s165 = sor.u32 %s163, %s164
      %s166 = ssub.s32 %s33, %s42
      %s167 = sor.u32 %s165, %s166
      %p168 = scmp.eq.s32.totalorder %s167, 0
      %s170 = sadd.s32 %s169, 1
      %s171 = scalar_select %p168, %s169, %s170
      %p174 = pneg %p168
      %p175 = scmp.eq.s32.totalorder %s24, 1
      %p176 = por %p174, %p175
      %p177 = scmp.ne.s32.totalorder %s169, %s172
      %p178 = scmp.eq.s32.totalorder %s24, 0
      %p179 = por %p177, %p178
      %p180 = scmp.ne.s32.totalorder %s169, %s172
      %p181 = scmp.eq.s32.totalorder %s29, 1
      %p182 = por %p180, %p181
      %p183 = scmp.ne.s32.totalorder %s172, %s173
      %p184 = scmp.eq.s32.totalorder %s29, 0
      %p185 = por %p183, %p184
      %p186 = scmp.ne.s32.totalorder %s172, %s173
      %p187 = scmp.eq.s32.totalorder %s30, 1
      %p188 = por %p186, %p187
      %p190 = scmp.ne.s32.totalorder %s173, %s189
      %p191 = scmp.eq.s32.totalorder %s30, 0
      %p192 = por %p190, %p191
      %s193 = ssub.s32 %s31, %s50
      %s194 = ssub.s32 %s32, %s46
      %s195 = sor.u32 %s193, %s194
      %s196 = ssub.s32 %s33, %s42
      %s197 = sor.u32 %s195, %s196
      %p198 = scmp.eq.s32.totalorder %s197, 0
      %s200 = sadd.s32 %s199, 1
      %s201 = scalar_select %p198, %s199, %s200
      %p204 = pneg %p198
      %p205 = scmp.eq.s32.totalorder %s24, 1
      %p206 = por %p204, %p205
      %p207 = scmp.ne.s32.totalorder %s199, %s202
      %p208 = scmp.eq.s32.totalorder %s24, 0
      %p209 = por %p207, %p208
      %p210 = scmp.ne.s32.totalorder %s199, %s202
      %p211 = scmp.eq.s32.totalorder %s29, 1
      %p212 = por %p210, %p211
      %p213 = scmp.ne.s32.totalorder %s202, %s203
      %p214 = scmp.eq.s32.totalorder %s29, 0
      %p215 = por %p213, %p214
      %p216 = scmp.ne.s32.totalorder %s202, %s203
      %p217 = scmp.eq.s32.totalorder %s30, 1
      %p218 = por %p216, %p217
      %p220 = scmp.ne.s32.totalorder %s203, %s219
      %p221 = scmp.eq.s32.totalorder %s30, 0
      %p222 = por %p220, %p221
      %s223 = ssub.s32 %s31, %s50
      %s224 = ssub.s32 %s33, %s42
      %s225 = sor.u32 %s223, %s224
      %p226 = scmp.eq.s32.totalorder %s225, 0
      %s228 = sadd.s32 %s227, 1
      %s229 = scalar_select %p226, %s227, %s228
      %p232 = pneg %p226
      %p233 = scmp.eq.s32.totalorder %s24, 1
      %p234 = por %p232, %p233
      %p235 = scmp.ne.s32.totalorder %s227, %s230
      %p236 = scmp.eq.s32.totalorder %s24, 0
      %p237 = por %p235, %p236
      %p238 = scmp.ne.s32.totalorder %s227, %s230
      %p239 = scmp.eq.s32.totalorder %s29, 1
      %p240 = por %p238, %p239
      %p241 = scmp.ne.s32.totalorder %s230, %s231
      %p242 = scmp.eq.s32.totalorder %s29, 0
      %p243 = por %p241, %p242
      %p244 = scmp.ne.s32.totalorder %s230, %s231
      %p245 = scmp.eq.s32.totalorder %s30, 1
      %p246 = por %p244, %p245
      %p248 = scmp.ne.s32.totalorder %s231, %s247
      %p249 = scmp.eq.s32.totalorder %s30, 0
      %p250 = por %p248, %p249
      %s251 = ssub.s32 %s31, %s50
      %s252 = ssub.s32 %s33, %s42
      %s253 = sor.u32 %s251, %s252
      %p254 = scmp.eq.s32.totalorder %s253, 0
      %s256 = sadd.s32 %s255, 1
      %s257 = scalar_select %p254, %s255, %s256
      %p260 = pneg %p254
      %p261 = scmp.eq.s32.totalorder %s24, 1
      %p262 = por %p260, %p261
      %p263 = scmp.ne.s32.totalorder %s255, %s258
      %p264 = scmp.eq.s32.totalorder %s24, 0
      %p265 = por %p263, %p264
      %p266 = scmp.ne.s32.totalorder %s255, %s258
      %p267 = scmp.eq.s32.totalorder %s29, 1
      %p268 = por %p266, %p267
      %p269 = scmp.ne.s32.totalorder %s258, %s259
      %p270 = scmp.eq.s32.totalorder %s29, 0
      %p271 = por %p269, %p270
      %p272 = scmp.ne.s32.totalorder %s258, %s259
      %p273 = scmp.eq.s32.totalorder %s30, 1
      %p274 = por %p272, %p273
      %p276 = scmp.ne.s32.totalorder %s259, %s275
      %p277 = scmp.eq.s32.totalorder %s30, 0
      %p278 = por %p276, %p277
      %s279 = ssub.s32 %s32, %s46
      %p280 = scmp.eq.s32.totalorder %s279, 0
      %s282 = sadd.s32 %s281, 1
      %s283 = scalar_select %p280, %s281, %s282
      %p286 = pneg %p280
      %p287 = scmp.eq.s32.totalorder %s24, 1
      %p288 = por %p286, %p287
      %p289 = scmp.ne.s32.totalorder %s281, %s284
      %p290 = scmp.eq.s32.totalorder %s24, 0
      %p291 = por %p289, %p290
      %p292 = scmp.ne.s32.totalorder %s281, %s284
      %p293 = scmp.eq.s32.totalorder %s29, 1
      %p294 = por %p292, %p293
      %p295 = scmp.ne.s32.totalorder %s284, %s285
      %p296 = scmp.eq.s32.totalorder %s29, 0
      %p297 = por %p295, %p296
      %p298 = scmp.ne.s32.totalorder %s284, %s285
      %p299 = scmp.eq.s32.totalorder %s30, 1
      %p300 = por %p298, %p299
      %p302 = scmp.ne.s32.totalorder %s285, %s301
      %p303 = scmp.eq.s32.totalorder %s30, 0
      %p304 = por %p302, %p303
      %s305 = ssub.s32 %s32, %s46
      %p306 = scmp.eq.s32.totalorder %s305, 0
      %s308 = sadd.s32 %s307, 1
      %s309 = scalar_select %p306, %s307, %s308
      %p312 = pneg %p306
      %p313 = scmp.eq.s32.totalorder %s24, 1
      %p314 = por %p312, %p313
      %p315 = scmp.ne.s32.totalorder %s307, %s310
      %p316 = scmp.eq.s32.totalorder %s24, 0
      %p317 = por %p315, %p316
      %p318 = scmp.ne.s32.totalorder %s307, %s310
      %p319 = scmp.eq.s32.totalorder %s29, 1
      %p320 = por %p318, %p319
      %p321 = scmp.ne.s32.totalorder %s310, %s311
      %p322 = scmp.eq.s32.totalorder %s29, 0
      %p323 = por %p321, %p322
      %p324 = scmp.ne.s32.totalorder %s310, %s311
      %p325 = scmp.eq.s32.totalorder %s30, 1
      %p326 = por %p324, %p325
      %p328 = scmp.ne.s32.totalorder %s311, %s327
      %p329 = scmp.eq.s32.totalorder %s30, 0
      %p330 = por %p328, %p329
      %s331 = ssub.s32 %s31, %s50
      %s332 = ssub.s32 %s32, %s46
      %s333 = sor.u32 %s331, %s332
      %p334 = scmp.eq.s32.totalorder %s333, 0
      %s336 = sadd.s32 %s335, 1
      %s337 = scalar_select %p334, %s335, %s336
      %p340 = pneg %p334
      %p341 = scmp.eq.s32.totalorder %s24, 1
      %p342 = por %p340, %p341
      %p343 = scmp.ne.s32.totalorder %s335, %s338
      %p344 = scmp.eq.s32.totalorder %s24, 0
      %p345 = por %p343, %p344
      %p346 = scmp.ne.s32.totalorder %s335, %s338
      %p347 = scmp.eq.s32.totalorder %s29, 1
      %p348 = por %p346, %p347
      %p349 = scmp.ne.s32.totalorder %s338, %s339
      %p350 = scmp.eq.s32.totalorder %s29, 0
      %p351 = por %p349, %p350
      %p352 = scmp.ne.s32.totalorder %s338, %s339
      %p353 = scmp.eq.s32.totalorder %s30, 1
      %p354 = por %p352, %p353
      %p356 = scmp.ne.s32.totalorder %s339, %s355
      %p357 = scmp.eq.s32.totalorder %s30, 0
      %p358 = por %p356, %p357
      %s359 = ssub.s32 %s31, %s50
      %s360 = ssub.s32 %s32, %s46
      %s361 = sor.u32 %s359, %s360
      %p362 = scmp.eq.s32.totalorder %s361, 0
      %s364 = sadd.s32 %s363, 1
      %s365 = scalar_select %p362, %s363, %s364
      %p368 = pneg %p362
      %p369 = scmp.eq.s32.totalorder %s24, 1
      %p370 = por %p368, %p369
      %p371 = scmp.ne.s32.totalorder %s363, %s366
      %p372 = scmp.eq.s32.totalorder %s24, 0
      %p373 = por %p371, %p372
      %p374 = scmp.ne.s32.totalorder %s363, %s366
      %p375 = scmp.eq.s32.totalorder %s29, 1
      %p376 = por %p374, %p375
      %p377 = scmp.ne.s32.totalorder %s366, %s367
      %p378 = scmp.eq.s32.totalorder %s29, 0
      %p379 = por %p377, %p378
      %p380 = scmp.ne.s32.totalorder %s366, %s367
      %p381 = scmp.eq.s32.totalorder %s30, 1
      %p382 = por %p380, %p381
      %p384 = scmp.ne.s32.totalorder %s367, %s383
      %p385 = scmp.eq.s32.totalorder %s30, 0
      %p386 = por %p384, %p385
      %p387 = scmp.le.s32.totalorder 1, %s24
      %p388 = scmp.lt.s32.totalorder %s24, 3
      %p389 = pnand %p387, %p388
      %p390 = pneg %p389
      // Predicated region
      $region9: #{tpu_custom_call.1} parent=5 // pred_check
        _
      $region10: #{tpu_custom_call.1} parent=5 // pred_check_branch
        %392 = sbr.rel (%p389) target = $region12
      $region11: #{tpu_custom_call.1} parent=5 // pred_region
        %s393 = ssub.s32 %s24, 1
        // Predicated region
        $region13: #{tpu_custom_call.1} parent=11 // pred_check
          %p394 = pneg %p297
        $region14: #{tpu_custom_call.1} parent=11 // pred_check_branch
          %396 = sbr.rel (%p394) target = $region16
        $region15: #{tpu_custom_call.1} parent=11 // pred_region
          %s397 = smul.u32 2, %s35
          %p398 = scmp.lt.s32.totalorder %s397, 1
          %s399 = scalar_select %p398, %s397, 1
          %s400 = smul.addr %s399, 8
          %s401 = scalar_lea.vmem %s8, %s400
          %s402 = smul.u32 2, %s35
        $region16: #{tpu_custom_call.1} parent=11 // pred_fallthru
          _
        // Predicated region
        $region17: #{tpu_custom_call.1} parent=11 // pred_check
          %p403 = pneg %p323
        $region18: #{tpu_custom_call.1} parent=11 // pred_check_branch
          %405 = sbr.rel (%p403) target = $region20
        $region19: #{tpu_custom_call.1} parent=11 // pred_region
          %s406 = smul.u32 2, %s35
          %p407 = scmp.lt.s32.totalorder %s406, 1
          %s408 = scalar_select %p407, %s406, 1
          %s409 = smul.addr %s408, 8
          %s410 = scalar_lea.vmem %s9, %s409
          %s411 = smul.u32 2, %s35
        $region20: #{tpu_custom_call.1} parent=11 // pred_fallthru
          _
      $region12: #{tpu_custom_call.1} parent=5 // pred_fallthru
        _
      %p412 = scmp.lt.s32.totalorder %s24, 2
      // Predicated region
      $region21: #{tpu_custom_call.1} parent=5 // pred_check
        %p413 = pneg %p412
      $region22: #{tpu_custom_call.1} parent=5 // pred_check_branch
        %415 = sbr.rel (%p413) target = $region24
      $region23: #{tpu_custom_call.1} parent=5 // pred_region
        // Predicated region
        $region25: #{tpu_custom_call.1} parent=23 // pred_check
          %p416 = pneg %p65
        $region26: #{tpu_custom_call.1} parent=23 // pred_check_branch
          %418 = sbr.rel (%p416) target = $region28
        $region27: #{tpu_custom_call.1} parent=23 // pred_region
          %p419 = scmp.lt.s32.totalorder %s31, 1
          %s420 = scalar_select %p419, %s31, 1
          %p421 = scmp.lt.s32.totalorder %s33, 0
          %s422 = scalar_select %p421, %s33, 0
          %s423 = sadd.s32 %s422, %s420
          %s424 = smul.addr %s423, 8
          %s425 = scalar_lea.vmem %s0, %s424
        $region28: #{tpu_custom_call.1} parent=23 // pred_fallthru
          _
        // Predicated region
        $region29: #{tpu_custom_call.1} parent=23 // pred_check
          %p426 = pneg %p93
        $region30: #{tpu_custom_call.1} parent=23 // pred_check_branch
          %428 = sbr.rel (%p426) target = $region32
        $region31: #{tpu_custom_call.1} parent=23 // pred_region
          %p429 = scmp.lt.s32.totalorder %s31, 1
          %s430 = scalar_select %p429, %s31, 1
          %p431 = scmp.lt.s32.totalorder %s33, 0
          %s432 = scalar_select %p431, %s33, 0
          %s433 = sadd.s32 %s432, %s430
          %s434 = smul.addr %s433, 8
          %s435 = scalar_lea.vmem %s1, %s434
        $region32: #{tpu_custom_call.1} parent=23 // pred_fallthru
          _
        // Predicated region
        $region33: #{tpu_custom_call.1} parent=23 // pred_check
          %p436 = pneg %p121
        $region34: #{tpu_custom_call.1} parent=23 // pred_check_branch
          %438 = sbr.rel (%p436) target = $region36
        $region35: #{tpu_custom_call.1} parent=23 // pred_region
          %p439 = scmp.lt.s32.totalorder %s31, 1
          %s440 = scalar_select %p439, %s31, 1
          %p441 = scmp.lt.s32.totalorder %s33, 0
          %s442 = scalar_select %p441, %s33, 0
          %s443 = sadd.s32 %s442, %s440
          %s444 = scalar_lea.vmem %s2, %s443
        $region36: #{tpu_custom_call.1} parent=23 // pred_fallthru
          _
        // Predicated region
        $region37: #{tpu_custom_call.1} parent=23 // pred_check
          %p445 = pneg %p149
        $region38: #{tpu_custom_call.1} parent=23 // pred_check_branch
          %447 = sbr.rel (%p445) target = $region40
        $region39: #{tpu_custom_call.1} parent=23 // pred_region
          %p448 = scmp.lt.s32.totalorder %s31, 1
          %s449 = scalar_select %p448, %s31, 1
          %p450 = scmp.lt.s32.totalorder %s33, 0
          %s451 = scalar_select %p450, %s33, 0
          %s452 = sadd.s32 %s451, %s449
          %s453 = scalar_lea.vmem %s3, %s452
        $region40: #{tpu_custom_call.1} parent=23 // pred_fallthru
          _
        // Predicated region
        $region41: #{tpu_custom_call.1} parent=23 // pred_check
          %p454 = pneg %p179
        $region42: #{tpu_custom_call.1} parent=23 // pred_check_branch
          %456 = sbr.rel (%p454) target = $region44
        $region43: #{tpu_custom_call.1} parent=23 // pred_region
          %s457 = smul.u32 2, %s32
          %p458 = scmp.lt.s32.totalorder %s31, 1
          %s459 = scalar_select %p458, %s31, 1
          %p460 = scmp.lt.s32.totalorder %s457, 1
          %s461 = scalar_select %p460, %s457, 1
          %p462 = scmp.lt.s32.totalorder %s33, 0
          %s463 = scalar_select %p462, %s33, 0
          %s464 = sadd.s32 %s463, %s461
          %s465 = smul.addr %s459, 2
          %s466 = sadd.s32 %s464, %s465
          %s467 = smul.addr %s466, 8
          %s468 = scalar_lea.vmem %s4, %s467
          %s469 = smul.u32 2, %s32
        $region44: #{tpu_custom_call.1} parent=23 // pred_fallthru
          _
        // Predicated region
        $region45: #{tpu_custom_call.1} parent=23 // pred_check
          %p470 = pneg %p209
        $region46: #{tpu_custom_call.1} parent=23 // pred_check_branch
          %472 = sbr.rel (%p470) target = $region48
        $region47: #{tpu_custom_call.1} parent=23 // pred_region
          %s473 = smul.u32 2, %s32
          %p474 = scmp.lt.s32.totalorder %s31, 1
          %s475 = scalar_select %p474, %s31, 1
          %p476 = scmp.lt.s32.totalorder %s473, 1
          %s477 = scalar_select %p476, %s473, 1
          %p478 = scmp.lt.s32.totalorder %s33, 0
          %s479 = scalar_select %p478, %s33, 0
          %s480 = sadd.s32 %s479, %s477
          %s481 = smul.addr %s475, 2
          %s482 = sadd.s32 %s480, %s481
          %s483 = smul.addr %s482, 8
          %s484 = scalar_lea.vmem %s5, %s483
          %s485 = smul.u32 2, %s32
        $region48: #{tpu_custom_call.1} parent=23 // pred_fallthru
          _
        // Predicated region
        $region49: #{tpu_custom_call.1} parent=23 // pred_check
          %p486 = pneg %p237
        $region50: #{tpu_custom_call.1} parent=23 // pred_check_branch
          %488 = sbr.rel (%p486) target = $region52
        $region51: #{tpu_custom_call.1} parent=23 // pred_region
          %s489 = smul.u32 16, %s33
          %p490 = scmp.lt.s32.totalorder %s31, 1
          %s491 = scalar_select %p490, %s31, 1
          %p492 = scmp.lt.s32.totalorder %s489, 15
          %s493 = scalar_select %p492, %s489, 15
          %s494 = smul.addr %s491, 16
          %s495 = sadd.s32 %s493, %s494
          %s496 = smul.addr %s495, 8
          %s497 = scalar_lea.vmem %s6, %s496
          %s498 = smul.u32 16, %s33
        $region52: #{tpu_custom_call.1} parent=23 // pred_fallthru
          _
        // Predicated region
        $region53: #{tpu_custom_call.1} parent=23 // pred_check
          %p499 = pneg %p265
        $region54: #{tpu_custom_call.1} parent=23 // pred_check_branch
          %501 = sbr.rel (%p499) target = $region56
        $region55: #{tpu_custom_call.1} parent=23 // pred_region
          %s502 = smul.u32 16, %s33
          %p503 = scmp.lt.s32.totalorder %s31, 1
          %s504 = scalar_select %p503, %s31, 1
          %p505 = scmp.lt.s32.totalorder %s502, 15
          %s506 = scalar_select %p505, %s502, 15
          %s507 = smul.addr %s504, 16
          %s508 = sadd.s32 %s506, %s507
          %s509 = smul.addr %s508, 8
          %s510 = scalar_lea.vmem %s7, %s509
          %s511 = smul.u32 16, %s33
        $region56: #{tpu_custom_call.1} parent=23 // pred_fallthru
          _
      $region24: #{tpu_custom_call.1} parent=5 // pred_fallthru
        _
      %p512 = scmp.le.s32.totalorder 1, %s24
      %p513 = scmp.lt.s32.totalorder %s24, 3
      %p514 = pnand %p512, %p513
      %p515 = pneg %p514
      // Predicated region
      $region57: #{tpu_custom_call.1} parent=5 // pred_check
        _
      $region58: #{tpu_custom_call.1} parent=5 // pred_check_branch
        %517 = sbr.rel (%p514) target = $region60
      $region59: #{tpu_custom_call.1} parent=5 // pred_region
        %s518 = ssub.s32 %s24, 1
        %p519 = scmp.lt.s32.totalorder %s34, 1
        %s520 = scalar_select %p519, %s34, 1
        %p521 = scmp.lt.s32.totalorder %s36, 0
        %s522 = scalar_select %p521, %s36, 0
        %s523 = sadd.s32 %s522, %s520
        %s524 = smul.addr %s523, 8
        %s525 = scalar_lea.vmem %s0, %s524
        %p526 = pneg %p71
        %p527 = pneg %p68
        %p528 = scmp.lt.s32.totalorder %s34, 1
        %s529 = scalar_select %p528, %s34, 1
        %p530 = scmp.lt.s32.totalorder %s36, 0
        %s531 = scalar_select %p530, %s36, 0
        %s532 = sadd.s32 %s531, %s529
        %s533 = smul.addr %s532, 8
        %s534 = scalar_lea.vmem %s1, %s533
        %p535 = pneg %p99
        %p536 = pneg %p96
        %p537 = scmp.lt.s32.totalorder %s34, 1
        %s538 = scalar_select %p537, %s34, 1
        %p539 = scmp.lt.s32.totalorder %s36, 0
        %s540 = scalar_select %p539, %s36, 0
        %s541 = sadd.s32 %s540, %s538
        %s542 = scalar_lea.vmem %s2, %s541
        %p543 = pneg %p127
        %p544 = pneg %p124
        %p545 = scmp.lt.s32.totalorder %s34, 1
        %s546 = scalar_select %p545, %s34, 1
        %p547 = scmp.lt.s32.totalorder %s36, 0
        %s548 = scalar_select %p547, %s36, 0
        %s549 = sadd.s32 %s548, %s546
        %s550 = scalar_lea.vmem %s3, %s549
        %p551 = pneg %p155
        %p552 = pneg %p152
        %s553 = smul.u32 2, %s35
        %p554 = scmp.lt.s32.totalorder %s34, 1
        %s555 = scalar_select %p554, %s34, 1
        %p556 = scmp.lt.s32.totalorder %s553, 1
        %s557 = scalar_select %p556, %s553, 1
        %p558 = scmp.lt.s32.totalorder %s36, 0
        %s559 = scalar_select %p558, %s36, 0
        %s560 = sadd.s32 %s559, %s557
        %s561 = smul.addr %s555, 2
        %s562 = sadd.s32 %s560, %s561
        %s563 = smul.addr %s562, 8
        %s564 = scalar_lea.vmem %s4, %s563
        %p565 = pneg %p185
        %p566 = pneg %p182
        %s567 = smul.u32 2, %s35
        %p568 = scmp.lt.s32.totalorder %s34, 1
        %s569 = scalar_select %p568, %s34, 1
        %p570 = scmp.lt.s32.totalorder %s567, 1
        %s571 = scalar_select %p570, %s567, 1
        %p572 = scmp.lt.s32.totalorder %s36, 0
        %s573 = scalar_select %p572, %s36, 0
        %s574 = sadd.s32 %s573, %s571
        %s575 = smul.addr %s569, 2
        %s576 = sadd.s32 %s574, %s575
        %s577 = smul.addr %s576, 8
        %s578 = scalar_lea.vmem %s5, %s577
        %p579 = pneg %p215
        %p580 = pneg %p212
        %s581 = smul.u32 16, %s36
        %p582 = scmp.lt.s32.totalorder %s34, 1
        %s583 = scalar_select %p582, %s34, 1
        %p584 = scmp.lt.s32.totalorder %s581, 15
        %s585 = scalar_select %p584, %s581, 15
        %s586 = smul.addr %s583, 16
        %s587 = sadd.s32 %s585, %s586
        %s588 = smul.addr %s587, 8
        %s589 = scalar_lea.vmem %s6, %s588
        %p590 = pneg %p243
        %p591 = pneg %p240
        %s592 = smul.u32 16, %s36
        %p593 = scmp.lt.s32.totalorder %s34, 1
        %s594 = scalar_select %p593, %s34, 1
        %p595 = scmp.lt.s32.totalorder %s592, 15
        %s596 = scalar_select %p595, %s592, 15
        %s597 = smul.addr %s594, 16
        %s598 = sadd.s32 %s596, %s597
        %s599 = smul.addr %s598, 8
        %s600 = scalar_lea.vmem %s7, %s599
        %p601 = pneg %p271
        %p602 = pneg %p268
        %s603 = smul.u32 2, %s35
        %p604 = scmp.lt.s32.totalorder %s603, 1
        %s605 = scalar_select %p604, %s603, 1
        %s606 = smul.addr %s605, 8
        %s607 = scalar_lea.vmem %s8, %s606
        %p608 = pneg %p297
        %p609 = pneg %p294
        %s610 = smul.u32 2, %s35
        %p611 = scmp.lt.s32.totalorder %s610, 1
        %s612 = scalar_select %p611, %s610, 1
        %s613 = smul.addr %s612, 8
        %s614 = scalar_lea.vmem %s9, %s613
        %p615 = pneg %p323
        %p616 = pneg %p320
        %p617 = pneg %p351
        %p618 = pneg %p348
        %s619 = sand.u32 %s338, 1
        %s620 = scalar_lea.sflag [#allocation5], %s619
        %s621 = sand.u32 %s338, 1
        %s622 = smul.addr %s621, 16
        %s623 = scalar_lea.vmem [#allocation4], %s622
        %p624 = pneg %p379
        %p625 = pneg %p376
        %s626 = sand.u32 %s366, 1
        %s627 = scalar_lea.sflag [#allocation7], %s626
        %s628 = sand.u32 %s366, 1
        %s629 = smul.addr %s628, 16
        %s630 = scalar_lea.vmem [#allocation6], %s629
        %p631 = scmp.lt.s32.totalorder %s34, 1
        %s632 = scalar_select %p631, %s34, 1
        %p633 = scmp.lt.s32.totalorder %s36, 0
        %s634 = scalar_select %p633, %s36, 0
        %s635 = sadd.s32 %s634, %s632
        %s636 = smul.addr %s635, 8
        %s637 = scalar_lea.vmem %s0, %s636
        %p638 = scmp.lt.s32.totalorder %s34, 1
        %s639 = scalar_select %p638, %s34, 1
        %p640 = scmp.lt.s32.totalorder %s36, 0
        %s641 = scalar_select %p640, %s36, 0
        %s642 = sadd.s32 %s641, %s639
        %s643 = smul.addr %s642, 8
        %s644 = scalar_lea.vmem %s1, %s643
        %p645 = scmp.lt.s32.totalorder %s34, 1
        %s646 = scalar_select %p645, %s34, 1
        %p647 = scmp.lt.s32.totalorder %s36, 0
        %s648 = scalar_select %p647, %s36, 0
        %s649 = sadd.s32 %s648, %s646
        %s650 = scalar_lea.vmem %s2, %s649
        %p651 = scmp.lt.s32.totalorder %s34, 1
        %s652 = scalar_select %p651, %s34, 1
        %p653 = scmp.lt.s32.totalorder %s36, 0
        %s654 = scalar_select %p653, %s36, 0
        %s655 = sadd.s32 %s654, %s652
        %s656 = scalar_lea.vmem %s3, %s655
        %s657 = smul.u32 2, %s35
        %p658 = scmp.lt.s32.totalorder %s34, 1
        %s659 = scalar_select %p658, %s34, 1
        %p660 = scmp.lt.s32.totalorder %s657, 1
        %s661 = scalar_select %p660, %s657, 1
        %p662 = scmp.lt.s32.totalorder %s36, 0
        %s663 = scalar_select %p662, %s36, 0
        %s664 = sadd.s32 %s663, %s661
        %s665 = smul.addr %s659, 2
        %s666 = sadd.s32 %s664, %s665
        %s667 = smul.addr %s666, 8
        %s668 = scalar_lea.vmem %s4, %s667
        %s669 = smul.u32 2, %s35
        %s670 = smul.u32 2, %s35
        %p671 = scmp.lt.s32.totalorder %s34, 1
        %s672 = scalar_select %p671, %s34, 1
        %p673 = scmp.lt.s32.totalorder %s670, 1
        %s674 = scalar_select %p673, %s670, 1
        %p675 = scmp.lt.s32.totalorder %s36, 0
        %s676 = scalar_select %p675, %s36, 0
        %s677 = sadd.s32 %s676, %s674
        %s678 = smul.addr %s672, 2
        %s679 = sadd.s32 %s677, %s678
        %s680 = smul.addr %s679, 8
        %s681 = scalar_lea.vmem %s5, %s680
        %s682 = smul.u32 2, %s35
        %s683 = smul.u32 16, %s36
        %p684 = scmp.lt.s32.totalorder %s34, 1
        %s685 = scalar_select %p684, %s34, 1
        %p686 = scmp.lt.s32.totalorder %s683, 15
        %s687 = scalar_select %p686, %s683, 15
        %s688 = smul.addr %s685, 16
        %s689 = sadd.s32 %s687, %s688
        %s690 = smul.addr %s689, 8
        %s691 = scalar_lea.vmem %s6, %s690
        %s692 = smul.u32 16, %s36
        %s693 = smul.u32 16, %s36
        %p694 = scmp.lt.s32.totalorder %s34, 1
        %s695 = scalar_select %p694, %s34, 1
        %p696 = scmp.lt.s32.totalorder %s693, 15
        %s697 = scalar_select %p696, %s693, 15
        %s698 = smul.addr %s695, 16
        %s699 = sadd.s32 %s697, %s698
        %s700 = smul.addr %s699, 8
        %s701 = scalar_lea.vmem %s7, %s700
        %s702 = smul.u32 16, %s36
        %s703 = smul.u32 2, %s35
        %p704 = scmp.lt.s32.totalorder %s703, 1
        %s705 = scalar_select %p704, %s703, 1
        %s706 = smul.addr %s705, 8
        %s707 = scalar_lea.vmem %s8, %s706
        %s708 = smul.u32 2, %s35
        %s709 = smul.u32 2, %s35
        %p710 = scmp.lt.s32.totalorder %s709, 1
        %s711 = scalar_select %p710, %s709, 1
        %s712 = smul.addr %s711, 8
        %s713 = scalar_lea.vmem %s9, %s712
        %s714 = smul.u32 2, %s35
        %s715 = smul.u32 2, %s35
        %s716 = smul.u32 2, %s35
        %p717 = scmp.eq.s32.totalorder %s36, 0
        // Predicated region
        $region61: #{tpu_custom_call.1} parent=59 // pred_check
          %p718 = pneg %p717
        $region62: #{tpu_custom_call.1} parent=59 // pred_check_branch
          %720 = sbr.rel (%p718) target = $region64
        $region63: #{tpu_custom_call.1} parent=59 // pred_region
          %vm721 = vcmask 130048
          %722 = vst.msk [vmem:[#allocation2] sm:$0xff] %vm721, 0.0
          %723 = vst.msk [vmem:[#allocation2 + $0x8] sm:$0xff] %vm721, 0.0
          %724 = vst.msk [vmem:[#allocation2 + $0x10] sm:$0xff] %vm721, 0.0
          %725 = vst.msk [vmem:[#allocation2 + $0x18] sm:$0xff] %vm721, 0.0
          %726 = vst.msk [vmem:[#allocation2 + $0x20] sm:$0xff] %vm721, 0.0
          %727 = vst.msk [vmem:[#allocation2 + $0x28] sm:$0xff] %vm721, 0.0
          %728 = vst.msk [vmem:[#allocation2 + $0x30] sm:$0xff] %vm721, 0.0
          %729 = vst.msk [vmem:[#allocation2 + $0x38] sm:$0xff] %vm721, 0.0
          %730 = vst.msk [vmem:[#allocation2 + $0x40] sm:$0xff] %vm721, 0.0
          %731 = vst.msk [vmem:[#allocation2 + $0x48] sm:$0xff] %vm721, 0.0
          %732 = vst.msk [vmem:[#allocation2 + $0x50] sm:$0xff] %vm721, 0.0
          %733 = vst.msk [vmem:[#allocation2 + $0x58] sm:$0xff] %vm721, 0.0
          %734 = vst.msk [vmem:[#allocation2 + $0x60] sm:$0xff] %vm721, 0.0
          %735 = vst.msk [vmem:[#allocation2 + $0x68] sm:$0xff] %vm721, 0.0
          %736 = vst.msk [vmem:[#allocation2 + $0x70] sm:$0xff] %vm721, 0.0
          %737 = vst.msk [vmem:[#allocation2 + $0x78] sm:$0xff] %vm721, 0.0
          %738 = vst.msk [vmem:[#allocation3] sm:$0xff] %vm721, 0.0
          %739 = vst.msk [vmem:[#allocation3 + $0x8] sm:$0xff] %vm721, 0.0
          %740 = vst.msk [vmem:[#allocation3 + $0x10] sm:$0xff] %vm721, 0.0
          %741 = vst.msk [vmem:[#allocation3 + $0x18] sm:$0xff] %vm721, 0.0
          %742 = vst.msk [vmem:[#allocation3 + $0x20] sm:$0xff] %vm721, 0.0
          %743 = vst.msk [vmem:[#allocation3 + $0x28] sm:$0xff] %vm721, 0.0
          %744 = vst.msk [vmem:[#allocation3 + $0x30] sm:$0xff] %vm721, 0.0
          %745 = vst.msk [vmem:[#allocation3 + $0x38] sm:$0xff] %vm721, 0.0
          %746 = vst.msk [vmem:[#allocation3 + $0x40] sm:$0xff] %vm721, 0.0
          %747 = vst.msk [vmem:[#allocation3 + $0x48] sm:$0xff] %vm721, 0.0
          %748 = vst.msk [vmem:[#allocation3 + $0x50] sm:$0xff] %vm721, 0.0
          %749 = vst.msk [vmem:[#allocation3 + $0x58] sm:$0xff] %vm721, 0.0
          %750 = vst.msk [vmem:[#allocation3 + $0x60] sm:$0xff] %vm721, 0.0
          %751 = vst.msk [vmem:[#allocation3 + $0x68] sm:$0xff] %vm721, 0.0
          %752 = vst.msk [vmem:[#allocation3 + $0x70] sm:$0xff] %vm721, 0.0
          %753 = vst.msk [vmem:[#allocation3 + $0x78] sm:$0xff] %vm721, 0.0
        $region64: #{tpu_custom_call.1} parent=59 // pred_fallthru
          _
        %v754 = vld [vmem:[%s637] sm:$0xff]
        %v755 = vld [vmem:[%s644] sm:$0xff]
        %v756 = vld [vmem:[%s650] sm:$0x1]
        %v757 = vld [vmem:[%s656] sm:$0x1]
        %v759 = vperm.slane %v756, 0
        %v761 = vmul.f32 %v754, %v759
        %v763 = vperm.slane %v757, 0
        %v765 = vmul.f32 %v755, %v763
        %v766 = vsub.f32 %v761, %v765
        %v767 = vmul.f32 %v754, %v763
        %v768 = vmul.f32 %v755, %v759
        %v769 = vadd.f32 %v767, %v768
        %v770 = vld [vmem:[%s668] sm:$0xff]
        %v771 = vld [vmem:[%s668 + $0x8] sm:$0xff]
        %v772 = vld [vmem:[%s681] sm:$0xff]
        %v773 = vld [vmem:[%s681 + $0x8] sm:$0xff]
        %v776 = vrot.slane %v766, 1
        %v777 = vrot.slane %v766, 2
        %v778 = vrot.slane %v766, 3
        %v779 = vrot.slane %v766, 4
        %v780 = vrot.slane %v766, 5
        %v781 = vrot.slane %v766, 6
        %v782 = vrot.slane %v766, 7
        %v783 = vrot.slane %v769, 1
        %v784 = vrot.slane %v769, 2
        %v785 = vrot.slane %v769, 3
        %v786 = vrot.slane %v769, 4
        %v787 = vrot.slane %v769, 5
        %v788 = vrot.slane %v769, 6
        %v789 = vrot.slane %v769, 7
        %v790 = vsub.f32 0.0, %v769
        %v792 = vrot.slane %v790, 1
        %v793 = vrot.slane %v790, 2
        %v794 = vrot.slane %v790, 3
        %v795 = vrot.slane %v790, 4
        %v796 = vrot.slane %v790, 5
        %v797 = vrot.slane %v790, 6
        %v798 = vrot.slane %v790, 7
        %v799 = vperm.slane %v766, 0
        %v800 = vperm.slane %v776, 0
        %v801 = vperm.slane %v777, 0
        %v802 = vperm.slane %v778, 0
        %v803 = vperm.slane %v779, 0
        %v804 = vperm.slane %v780, 0
        %v805 = vperm.slane %v781, 0
        %v806 = vperm.slane %v782, 0
        %v807 = vperm.slane %v769, 0
        %v808 = vperm.slane %v783, 0
        %v809 = vperm.slane %v784, 0
        %v810 = vperm.slane %v785, 0
        %v811 = vperm.slane %v786, 0
        %v812 = vperm.slane %v787, 0
        %v813 = vperm.slane %v788, 0
        %v814 = vperm.slane %v789, 0
        %v831 = vmul.f32 %v799, %v770
        %v832 = vmul.f32 %v799, %v771
        %v833 = vmul.f32 %v800, %v770
        %v834 = vmul.f32 %v800, %v771
        %v835 = vmul.f32 %v801, %v770
        %v836 = vmul.f32 %v801, %v771
        %v837 = vmul.f32 %v802, %v770
        %v838 = vmul.f32 %v802, %v771
        %v839 = vmul.f32 %v803, %v770
        %v840 = vmul.f32 %v803, %v771
        %v841 = vmul.f32 %v804, %v770
        %v842 = vmul.f32 %v804, %v771
        %v843 = vmul.f32 %v805, %v770
        %v844 = vmul.f32 %v805, %v771
        %v845 = vmul.f32 %v806, %v770
        %v846 = vmul.f32 %v806, %v771
        %v847 = vmul.f32 %v807, %v770
        %v848 = vmul.f32 %v807, %v771
        %v849 = vmul.f32 %v808, %v770
        %v850 = vmul.f32 %v808, %v771
        %v851 = vmul.f32 %v809, %v770
        %v852 = vmul.f32 %v809, %v771
        %v853 = vmul.f32 %v810, %v770
        %v854 = vmul.f32 %v810, %v771
        %v855 = vmul.f32 %v811, %v770
        %v856 = vmul.f32 %v811, %v771
        %v857 = vmul.f32 %v812, %v770
        %v858 = vmul.f32 %v812, %v771
        %v859 = vmul.f32 %v813, %v770
        %v860 = vmul.f32 %v813, %v771
        %v861 = vmul.f32 %v814, %v770
        %v862 = vmul.f32 %v814, %v771
        %v863 = vperm.slane %v790, 0
        %v864 = vperm.slane %v792, 0
        %v865 = vperm.slane %v793, 0
        %v866 = vperm.slane %v794, 0
        %v867 = vperm.slane %v795, 0
        %v868 = vperm.slane %v796, 0
        %v869 = vperm.slane %v797, 0
        %v870 = vperm.slane %v798, 0
        %v879 = vmul.f32 %v863, %v772
        %v880 = vmul.f32 %v863, %v773
        %v881 = vmul.f32 %v864, %v772
        %v882 = vmul.f32 %v864, %v773
        %v883 = vmul.f32 %v865, %v772
        %v884 = vmul.f32 %v865, %v773
        %v885 = vmul.f32 %v866, %v772
        %v886 = vmul.f32 %v866, %v773
        %v887 = vmul.f32 %v867, %v772
        %v888 = vmul.f32 %v867, %v773
        %v889 = vmul.f32 %v868, %v772
        %v890 = vmul.f32 %v868, %v773
        %v891 = vmul.f32 %v869, %v772
        %v892 = vmul.f32 %v869, %v773
        %v893 = vmul.f32 %v870, %v772
        %v894 = vmul.f32 %v870, %v773
        %v895 = vmul.f32 %v799, %v772
        %v896 = vmul.f32 %v799, %v773
        %v897 = vmul.f32 %v800, %v772
        %v898 = vmul.f32 %v800, %v773
        %v899 = vmul.f32 %v801, %v772
        %v900 = vmul.f32 %v801, %v773
        %v901 = vmul.f32 %v802, %v772
        %v902 = vmul.f32 %v802, %v773
        %v903 = vmul.f32 %v803, %v772
        %v904 = vmul.f32 %v803, %v773
        %v905 = vmul.f32 %v804, %v772
        %v906 = vmul.f32 %v804, %v773
        %v907 = vmul.f32 %v805, %v772
        %v908 = vmul.f32 %v805, %v773
        %v909 = vmul.f32 %v806, %v772
        %v910 = vmul.f32 %v806, %v773
        %v911 = vadd.f32 %v831, %v879
        %v912 = vadd.f32 %v832, %v880
        %v913 = vadd.f32 %v833, %v881
        %v914 = vadd.f32 %v834, %v882
        %v915 = vadd.f32 %v835, %v883
        %v916 = vadd.f32 %v836, %v884
        %v917 = vadd.f32 %v837, %v885
        %v918 = vadd.f32 %v838, %v886
        %v919 = vadd.f32 %v839, %v887
        %v920 = vadd.f32 %v840, %v888
        %v921 = vadd.f32 %v841, %v889
        %v922 = vadd.f32 %v842, %v890
        %v923 = vadd.f32 %v843, %v891
        %v924 = vadd.f32 %v844, %v892
        %v925 = vadd.f32 %v845, %v893
        %v926 = vadd.f32 %v846, %v894
        %v927 = vadd.f32 %v847, %v895
        %v928 = vadd.f32 %v848, %v896
        %v929 = vadd.f32 %v849, %v897
        %v930 = vadd.f32 %v850, %v898
        %v931 = vadd.f32 %v851, %v899
        %v932 = vadd.f32 %v852, %v900
        %v933 = vadd.f32 %v853, %v901
        %v934 = vadd.f32 %v854, %v902
        %v935 = vadd.f32 %v855, %v903
        %v936 = vadd.f32 %v856, %v904
        %v937 = vadd.f32 %v857, %v905
        %v938 = vadd.f32 %v858, %v906
        %v939 = vadd.f32 %v859, %v907
        %v940 = vadd.f32 %v860, %v908
        %v941 = vadd.f32 %v861, %v909
        %v942 = vadd.f32 %v862, %v910
        %v943 = vpack.c.bf16 %v912, %v911
        %v944 = vpack.c.bf16 %v914, %v913
        %v945 = vpack.c.bf16 %v916, %v915
        %v946 = vpack.c.bf16 %v918, %v917
        %v947 = vpack.c.bf16 %v920, %v919
        %v948 = vpack.c.bf16 %v922, %v921
        %v949 = vpack.c.bf16 %v924, %v923
        %v950 = vpack.c.bf16 %v926, %v925
        %v951 = vpack.c.bf16 %v928, %v927
        %v952 = vpack.c.bf16 %v930, %v929
        %v953 = vpack.c.bf16 %v932, %v931
        %v954 = vpack.c.bf16 %v934, %v933
        %v955 = vpack.c.bf16 %v936, %v935
        %v956 = vpack.c.bf16 %v938, %v937
        %v957 = vpack.c.bf16 %v940, %v939
        %v958 = vpack.c.bf16 %v942, %v941
        %v959 = vld [vmem:[%s691] sm:$0xff]
        %v960 = vld [vmem:[%s691 + $0x8] sm:$0xff]
        %v961 = vld [vmem:[%s691 + $0x10] sm:$0xff]
        %v962 = vld [vmem:[%s691 + $0x18] sm:$0xff]
        %v963 = vld [vmem:[%s691 + $0x20] sm:$0xff]
        %v964 = vld [vmem:[%s691 + $0x28] sm:$0xff]
        %v965 = vld [vmem:[%s691 + $0x30] sm:$0xff]
        %v966 = vld [vmem:[%s691 + $0x38] sm:$0xff]
        %v967 = vld [vmem:[%s691 + $0x40] sm:$0xff]
        %v968 = vld [vmem:[%s691 + $0x48] sm:$0xff]
        %v969 = vld [vmem:[%s691 + $0x50] sm:$0xff]
        %v970 = vld [vmem:[%s691 + $0x58] sm:$0xff]
        %v971 = vld [vmem:[%s691 + $0x60] sm:$0xff]
        %v972 = vld [vmem:[%s691 + $0x68] sm:$0xff]
        %v973 = vld [vmem:[%s691 + $0x70] sm:$0xff]
        %v974 = vld [vmem:[%s691 + $0x78] sm:$0xff]
        %v975 = vpack.c.bf16 %v960, %v959
        %v976 = vpack.c.bf16 %v962, %v961
        %v977 = vpack.c.bf16 %v964, %v963
        %v978 = vpack.c.bf16 %v966, %v965
        %v979 = vpack.c.bf16 %v968, %v967
        %v980 = vpack.c.bf16 %v970, %v969
        %v981 = vpack.c.bf16 %v972, %v971
        %v982 = vpack.c.bf16 %v974, %v973
        %v983 = vld [vmem:[%s701] sm:$0xff]
        %v984 = vld [vmem:[%s701 + $0x8] sm:$0xff]
        %v985 = vld [vmem:[%s701 + $0x10] sm:$0xff]
        %v986 = vld [vmem:[%s701 + $0x18] sm:$0xff]
        %v987 = vld [vmem:[%s701 + $0x20] sm:$0xff]
        %v988 = vld [vmem:[%s701 + $0x28] sm:$0xff]
        %v989 = vld [vmem:[%s701 + $0x30] sm:$0xff]
        %v990 = vld [vmem:[%s701 + $0x38] sm:$0xff]
        %v991 = vld [vmem:[%s701 + $0x40] sm:$0xff]
        %v992 = vld [vmem:[%s701 + $0x48] sm:$0xff]
        %v993 = vld [vmem:[%s701 + $0x50] sm:$0xff]
        %v994 = vld [vmem:[%s701 + $0x58] sm:$0xff]
        %v995 = vld [vmem:[%s701 + $0x60] sm:$0xff]
        %v996 = vld [vmem:[%s701 + $0x68] sm:$0xff]
        %v997 = vld [vmem:[%s701 + $0x70] sm:$0xff]
        %v998 = vld [vmem:[%s701 + $0x78] sm:$0xff]
        %v999 = vpack.c.bf16 %v984, %v983
        %v1000 = vpack.c.bf16 %v986, %v985
        %v1001 = vpack.c.bf16 %v988, %v987
        %v1002 = vpack.c.bf16 %v990, %v989
        %v1003 = vpack.c.bf16 %v992, %v991
        %v1004 = vpack.c.bf16 %v994, %v993
        %v1005 = vpack.c.bf16 %v996, %v995
        %v1006 = vpack.c.bf16 %v998, %v997
        %1007 = vmatpush.bf16.msra.mxu0 %v982
        %1008 = vmatpush.bf16.msra.mxu0 %v981
        %1009 = vmatpush.bf16.msra.mxu0 %v980
        %1010 = vmatpush.bf16.msra.mxu0 %v979
        %1011 = vmatpush.bf16.msra.mxu0 %v978
        %1012 = vmatpush.bf16.msra.mxu0 %v977
        %1013 = vmatpush.bf16.msra.mxu0 %v976
        %1014 = vmatpush.bf16.msra.mxu0 %v975
        %1015 = vmatmul.bf16.gmra.mxu0 %v943
        %v1016 = vpop.f32.mrf.mxu0
        %v1017 = vadd.f32 0.0, %v1016
        %v1018 = vpop.f32.mrf.mxu0
        %v1019 = vadd.f32 0.0, %v1018
        %1020 = vmatmul.bf16.gmra.mxu0 %v944
        %v1021 = vpop.f32.mrf.mxu0
        %v1022 = vadd.f32 0.0, %v1021
        %v1023 = vpop.f32.mrf.mxu0
        %v1024 = vadd.f32 0.0, %v1023
        %1025 = vmatmul.bf16.gmra.mxu0 %v945
        %v1026 = vpop.f32.mrf.mxu0
        %v1027 = vadd.f32 0.0, %v1026
        %v1028 = vpop.f32.mrf.mxu0
        %v1029 = vadd.f32 0.0, %v1028
        %1030 = vmatmul.bf16.gmra.mxu0 %v946
        %v1031 = vpop.f32.mrf.mxu0
        %v1032 = vadd.f32 0.0, %v1031
        %v1033 = vpop.f32.mrf.mxu0
        %v1034 = vadd.f32 0.0, %v1033
        %1035 = vmatmul.bf16.gmra.mxu0 %v947
        %v1036 = vpop.f32.mrf.mxu0
        %v1037 = vadd.f32 0.0, %v1036
        %v1038 = vpop.f32.mrf.mxu0
        %v1039 = vadd.f32 0.0, %v1038
        %1040 = vmatmul.bf16.gmra.mxu0 %v948
        %v1041 = vpop.f32.mrf.mxu0
        %v1042 = vadd.f32 0.0, %v1041
        %v1043 = vpop.f32.mrf.mxu0
        %v1044 = vadd.f32 0.0, %v1043
        %1045 = vmatmul.bf16.gmra.mxu0 %v949
        %v1046 = vpop.f32.mrf.mxu0
        %v1047 = vadd.f32 0.0, %v1046
        %v1048 = vpop.f32.mrf.mxu0
        %v1049 = vadd.f32 0.0, %v1048
        %1050 = vmatmul.bf16.gmra.mxu0 %v950
        %v1051 = vpop.f32.mrf.mxu0
        %v1052 = vadd.f32 0.0, %v1051
        %v1053 = vpop.f32.mrf.mxu0
        %v1054 = vadd.f32 0.0, %v1053
        %1055 = vmatmul.bf16.gmra.mxu0 %v951
        %v1056 = vpop.f32.mrf.mxu0
        %v1057 = vadd.f32 0.0, %v1056
        %v1058 = vpop.f32.mrf.mxu0
        %v1059 = vadd.f32 0.0, %v1058
        %1060 = vmatmul.bf16.gmra.mxu0 %v952
        %v1061 = vpop.f32.mrf.mxu0
        %v1062 = vadd.f32 0.0, %v1061
        %v1063 = vpop.f32.mrf.mxu0
        %v1064 = vadd.f32 0.0, %v1063
        %1065 = vmatmul.bf16.gmra.mxu0 %v953
        %v1066 = vpop.f32.mrf.mxu0
        %v1067 = vadd.f32 0.0, %v1066
        %v1068 = vpop.f32.mrf.mxu0
        %v1069 = vadd.f32 0.0, %v1068
        %1070 = vmatmul.bf16.gmra.mxu0 %v954
        %v1071 = vpop.f32.mrf.mxu0
        %v1072 = vadd.f32 0.0, %v1071
        %v1073 = vpop.f32.mrf.mxu0
        %v1074 = vadd.f32 0.0, %v1073
        %1075 = vmatmul.bf16.gmra.mxu0 %v955
        %v1076 = vpop.f32.mrf.mxu0
        %v1077 = vadd.f32 0.0, %v1076
        %v1078 = vpop.f32.mrf.mxu0
        %v1079 = vadd.f32 0.0, %v1078
        %1080 = vmatmul.bf16.gmra.mxu0 %v956
        %v1081 = vpop.f32.mrf.mxu0
        %v1082 = vadd.f32 0.0, %v1081
        %v1083 = vpop.f32.mrf.mxu0
        %v1084 = vadd.f32 0.0, %v1083
        %1085 = vmatmul.bf16.gmra.mxu0 %v957
        %v1086 = vpop.f32.mrf.mxu0
        %v1087 = vadd.f32 0.0, %v1086
        %v1088 = vpop.f32.mrf.mxu0
        %v1089 = vadd.f32 0.0, %v1088
        %1090 = vmatmul.bf16.gmra.mxu0 %v958
        %v1091 = vpop.f32.mrf.mxu0
        %v1092 = vadd.f32 0.0, %v1091
        %v1093 = vpop.f32.mrf.mxu0
        %v1094 = vadd.f32 0.0, %v1093
        %1095 = vdwg.mxu0
        %1096 = vmatpush.bf16.msra.mxu0 %v1006
        %1097 = vmatpush.bf16.msra.mxu0 %v1005
        %1098 = vmatpush.bf16.msra.mxu0 %v1004
        %1099 = vmatpush.bf16.msra.mxu0 %v1003
        %1100 = vmatpush.bf16.msra.mxu0 %v1002
        %1101 = vmatpush.bf16.msra.mxu0 %v1001
        %1102 = vmatpush.bf16.msra.mxu0 %v1000
        %1103 = vmatpush.bf16.msra.mxu0 %v999
        %1104 = vmatmul.bf16.gmra.mxu0 %v943
        %v1105 = vpop.f32.mrf.mxu0
        %v1106 = vadd.f32 0.0, %v1105
        %v1107 = vpop.f32.mrf.mxu0
        %v1108 = vadd.f32 0.0, %v1107
        %1109 = vmatmul.bf16.gmra.mxu0 %v944
        %v1110 = vpop.f32.mrf.mxu0
        %v1111 = vadd.f32 0.0, %v1110
        %v1112 = vpop.f32.mrf.mxu0
        %v1113 = vadd.f32 0.0, %v1112
        %1114 = vmatmul.bf16.gmra.mxu0 %v945
        %v1115 = vpop.f32.mrf.mxu0
        %v1116 = vadd.f32 0.0, %v1115
        %v1117 = vpop.f32.mrf.mxu0
        %v1118 = vadd.f32 0.0, %v1117
        %1119 = vmatmul.bf16.gmra.mxu0 %v946
        %v1120 = vpop.f32.mrf.mxu0
        %v1121 = vadd.f32 0.0, %v1120
        %v1122 = vpop.f32.mrf.mxu0
        %v1123 = vadd.f32 0.0, %v1122
        %1124 = vmatmul.bf16.gmra.mxu0 %v947
        %v1125 = vpop.f32.mrf.mxu0
        %v1126 = vadd.f32 0.0, %v1125
        %v1127 = vpop.f32.mrf.mxu0
        %v1128 = vadd.f32 0.0, %v1127
        %1129 = vmatmul.bf16.gmra.mxu0 %v948
        %v1130 = vpop.f32.mrf.mxu0
        %v1131 = vadd.f32 0.0, %v1130
        %v1132 = vpop.f32.mrf.mxu0
        %v1133 = vadd.f32 0.0, %v1132
        %1134 = vmatmul.bf16.gmra.mxu0 %v949
        %v1135 = vpop.f32.mrf.mxu0
        %v1136 = vadd.f32 0.0, %v1135
        %v1137 = vpop.f32.mrf.mxu0
        %v1138 = vadd.f32 0.0, %v1137
        %1139 = vmatmul.bf16.gmra.mxu0 %v950
        %v1140 = vpop.f32.mrf.mxu0
        %v1141 = vadd.f32 0.0, %v1140
        %v1142 = vpop.f32.mrf.mxu0
        %v1143 = vadd.f32 0.0, %v1142
        %1144 = vmatmul.bf16.gmra.mxu0 %v951
        %v1145 = vpop.f32.mrf.mxu0
        %v1146 = vadd.f32 0.0, %v1145
        %v1147 = vpop.f32.mrf.mxu0
        %v1148 = vadd.f32 0.0, %v1147
        %1149 = vmatmul.bf16.gmra.mxu0 %v952
        %v1150 = vpop.f32.mrf.mxu0
        %v1151 = vadd.f32 0.0, %v1150
        %v1152 = vpop.f32.mrf.mxu0
        %v1153 = vadd.f32 0.0, %v1152
        %1154 = vmatmul.bf16.gmra.mxu0 %v953
        %v1155 = vpop.f32.mrf.mxu0
        %v1156 = vadd.f32 0.0, %v1155
        %v1157 = vpop.f32.mrf.mxu0
        %v1158 = vadd.f32 0.0, %v1157
        %1159 = vmatmul.bf16.gmra.mxu0 %v954
        %v1160 = vpop.f32.mrf.mxu0
        %v1161 = vadd.f32 0.0, %v1160
        %v1162 = vpop.f32.mrf.mxu0
        %v1163 = vadd.f32 0.0, %v1162
        %1164 = vmatmul.bf16.gmra.mxu0 %v955
        %v1165 = vpop.f32.mrf.mxu0
        %v1166 = vadd.f32 0.0, %v1165
        %v1167 = vpop.f32.mrf.mxu0
        %v1168 = vadd.f32 0.0, %v1167
        %1169 = vmatmul.bf16.gmra.mxu0 %v956
        %v1170 = vpop.f32.mrf.mxu0
        %v1171 = vadd.f32 0.0, %v1170
        %v1172 = vpop.f32.mrf.mxu0
        %v1173 = vadd.f32 0.0, %v1172
        %1174 = vmatmul.bf16.gmra.mxu0 %v957
        %v1175 = vpop.f32.mrf.mxu0
        %v1176 = vadd.f32 0.0, %v1175
        %v1177 = vpop.f32.mrf.mxu0
        %v1178 = vadd.f32 0.0, %v1177
        %1179 = vmatmul.bf16.gmra.mxu0 %v958
        %v1180 = vpop.f32.mrf.mxu0
        %v1181 = vadd.f32 0.0, %v1180
        %v1182 = vpop.f32.mrf.mxu0
        %v1183 = vadd.f32 0.0, %v1182
        %1184 = vdwg.mxu0
        %v1185 = vld [vmem:[#allocation2] sm:$0xff]
        %v1186 = vld [vmem:[#allocation2 + $0x8] sm:$0xff]
        %v1187 = vld [vmem:[#allocation2 + $0x10] sm:$0xff]
        %v1188 = vld [vmem:[#allocation2 + $0x18] sm:$0xff]
        %v1189 = vld [vmem:[#allocation2 + $0x20] sm:$0xff]
        %v1190 = vld [vmem:[#allocation2 + $0x28] sm:$0xff]
        %v1191 = vld [vmem:[#allocation2 + $0x30] sm:$0xff]
        %v1192 = vld [vmem:[#allocation2 + $0x38] sm:$0xff]
        %v1193 = vld [vmem:[#allocation2 + $0x40] sm:$0xff]
        %v1194 = vld [vmem:[#allocation2 + $0x48] sm:$0xff]
        %v1195 = vld [vmem:[#allocation2 + $0x50] sm:$0xff]
        %v1196 = vld [vmem:[#allocation2 + $0x58] sm:$0xff]
        %v1197 = vld [vmem:[#allocation2 + $0x60] sm:$0xff]
        %v1198 = vld [vmem:[#allocation2 + $0x68] sm:$0xff]
        %v1199 = vld [vmem:[#allocation2 + $0x70] sm:$0xff]
        %v1200 = vld [vmem:[#allocation2 + $0x78] sm:$0xff]
        %v1201 = vsub.f32 %v1017, %v1146
        %v1202 = vsub.f32 %v1019, %v1148
        %v1203 = vsub.f32 %v1022, %v1151
        %v1204 = vsub.f32 %v1024, %v1153
        %v1205 = vsub.f32 %v1027, %v1156
        %v1206 = vsub.f32 %v1029, %v1158
        %v1207 = vsub.f32 %v1032, %v1161
        %v1208 = vsub.f32 %v1034, %v1163
        %v1209 = vsub.f32 %v1037, %v1166
        %v1210 = vsub.f32 %v1039, %v1168
        %v1211 = vsub.f32 %v1042, %v1171
        %v1212 = vsub.f32 %v1044, %v1173
        %v1213 = vsub.f32 %v1047, %v1176
        %v1214 = vsub.f32 %v1049, %v1178
        %v1215 = vsub.f32 %v1052, %v1181
        %v1216 = vsub.f32 %v1054, %v1183
        %v1217 = vadd.f32 %v1185, %v1201
        %v1218 = vadd.f32 %v1186, %v1202
        %v1219 = vadd.f32 %v1187, %v1203
        %v1220 = vadd.f32 %v1188, %v1204
        %v1221 = vadd.f32 %v1189, %v1205
        %v1222 = vadd.f32 %v1190, %v1206
        %v1223 = vadd.f32 %v1191, %v1207
        %v1224 = vadd.f32 %v1192, %v1208
        %v1225 = vadd.f32 %v1193, %v1209
        %v1226 = vadd.f32 %v1194, %v1210
        %v1227 = vadd.f32 %v1195, %v1211
        %v1228 = vadd.f32 %v1196, %v1212
        %v1229 = vadd.f32 %v1197, %v1213
        %v1230 = vadd.f32 %v1198, %v1214
        %v1231 = vadd.f32 %v1199, %v1215
        %v1232 = vadd.f32 %v1200, %v1216
        %vm1233 = vcmask 130048
        %1234 = vst.msk [vmem:[#allocation2] sm:$0xff] %vm1233, %v1217
        %1235 = vst.msk [vmem:[#allocation2 + $0x8] sm:$0xff] %vm1233, %v1218
        %1236 = vst.msk [vmem:[#allocation2 + $0x10] sm:$0xff] %vm1233, %v1219
        %1237 = vst.msk [vmem:[#allocation2 + $0x18] sm:$0xff] %vm1233, %v1220
        %1238 = vst.msk [vmem:[#allocation2 + $0x20] sm:$0xff] %vm1233, %v1221
        %1239 = vst.msk [vmem:[#allocation2 + $0x28] sm:$0xff] %vm1233, %v1222
        %1240 = vst.msk [vmem:[#allocation2 + $0x30] sm:$0xff] %vm1233, %v1223
        %1241 = vst.msk [vmem:[#allocation2 + $0x38] sm:$0xff] %vm1233, %v1224
        %1242 = vst.msk [vmem:[#allocation2 + $0x40] sm:$0xff] %vm1233, %v1225
        %1243 = vst.msk [vmem:[#allocation2 + $0x48] sm:$0xff] %vm1233, %v1226
        %1244 = vst.msk [vmem:[#allocation2 + $0x50] sm:$0xff] %vm1233, %v1227
        %1245 = vst.msk [vmem:[#allocation2 + $0x58] sm:$0xff] %vm1233, %v1228
        %1246 = vst.msk [vmem:[#allocation2 + $0x60] sm:$0xff] %vm1233, %v1229
        %1247 = vst.msk [vmem:[#allocation2 + $0x68] sm:$0xff] %vm1233, %v1230
        %1248 = vst.msk [vmem:[#allocation2 + $0x70] sm:$0xff] %vm1233, %v1231
        %1249 = vst.msk [vmem:[#allocation2 + $0x78] sm:$0xff] %vm1233, %v1232
        %v1250 = vld [vmem:[#allocation3] sm:$0xff]
        %v1251 = vld [vmem:[#allocation3 + $0x8] sm:$0xff]
        %v1252 = vld [vmem:[#allocation3 + $0x10] sm:$0xff]
        %v1253 = vld [vmem:[#allocation3 + $0x18] sm:$0xff]
        %v1254 = vld [vmem:[#allocation3 + $0x20] sm:$0xff]
        %v1255 = vld [vmem:[#allocation3 + $0x28] sm:$0xff]
        %v1256 = vld [vmem:[#allocation3 + $0x30] sm:$0xff]
        %v1257 = vld [vmem:[#allocation3 + $0x38] sm:$0xff]
        %v1258 = vld [vmem:[#allocation3 + $0x40] sm:$0xff]
        %v1259 = vld [vmem:[#allocation3 + $0x48] sm:$0xff]
        %v1260 = vld [vmem:[#allocation3 + $0x50] sm:$0xff]
        %v1261 = vld [vmem:[#allocation3 + $0x58] sm:$0xff]
        %v1262 = vld [vmem:[#allocation3 + $0x60] sm:$0xff]
        %v1263 = vld [vmem:[#allocation3 + $0x68] sm:$0xff]
        %v1264 = vld [vmem:[#allocation3 + $0x70] sm:$0xff]
        %v1265 = vld [vmem:[#allocation3 + $0x78] sm:$0xff]
        %v1266 = vadd.f32 %v1106, %v1057
        %v1267 = vadd.f32 %v1108, %v1059
        %v1268 = vadd.f32 %v1111, %v1062
        %v1269 = vadd.f32 %v1113, %v1064
        %v1270 = vadd.f32 %v1116, %v1067
        %v1271 = vadd.f32 %v1118, %v1069
        %v1272 = vadd.f32 %v1121, %v1072
        %v1273 = vadd.f32 %v1123, %v1074
        %v1274 = vadd.f32 %v1126, %v1077
        %v1275 = vadd.f32 %v1128, %v1079
        %v1276 = vadd.f32 %v1131, %v1082
        %v1277 = vadd.f32 %v1133, %v1084
        %v1278 = vadd.f32 %v1136, %v1087
        %v1279 = vadd.f32 %v1138, %v1089
        %v1280 = vadd.f32 %v1141, %v1092
        %v1281 = vadd.f32 %v1143, %v1094
        %v1282 = vadd.f32 %v1250, %v1266
        %v1283 = vadd.f32 %v1251, %v1267
        %v1284 = vadd.f32 %v1252, %v1268
        %v1285 = vadd.f32 %v1253, %v1269
        %v1286 = vadd.f32 %v1254, %v1270
        %v1287 = vadd.f32 %v1255, %v1271
        %v1288 = vadd.f32 %v1256, %v1272
        %v1289 = vadd.f32 %v1257, %v1273
        %v1290 = vadd.f32 %v1258, %v1274
        %v1291 = vadd.f32 %v1259, %v1275
        %v1292 = vadd.f32 %v1260, %v1276
        %v1293 = vadd.f32 %v1261, %v1277
        %v1294 = vadd.f32 %v1262, %v1278
        %v1295 = vadd.f32 %v1263, %v1279
        %v1296 = vadd.f32 %v1264, %v1280
        %v1297 = vadd.f32 %v1265, %v1281
        %1298 = vst.msk [vmem:[#allocation3] sm:$0xff] %vm1233, %v1282
        %1299 = vst.msk [vmem:[#allocation3 + $0x8] sm:$0xff] %vm1233, %v1283
        %1300 = vst.msk [vmem:[#allocation3 + $0x10] sm:$0xff] %vm1233, %v1284
        %1301 = vst.msk [vmem:[#allocation3 + $0x18] sm:$0xff] %vm1233, %v1285
        %1302 = vst.msk [vmem:[#allocation3 + $0x20] sm:$0xff] %vm1233, %v1286
        %1303 = vst.msk [vmem:[#allocation3 + $0x28] sm:$0xff] %vm1233, %v1287
        %1304 = vst.msk [vmem:[#allocation3 + $0x30] sm:$0xff] %vm1233, %v1288
        %1305 = vst.msk [vmem:[#allocation3 + $0x38] sm:$0xff] %vm1233, %v1289
        %1306 = vst.msk [vmem:[#allocation3 + $0x40] sm:$0xff] %vm1233, %v1290
        %1307 = vst.msk [vmem:[#allocation3 + $0x48] sm:$0xff] %vm1233, %v1291
        %1308 = vst.msk [vmem:[#allocation3 + $0x50] sm:$0xff] %vm1233, %v1292
        %1309 = vst.msk [vmem:[#allocation3 + $0x58] sm:$0xff] %vm1233, %v1293
        %1310 = vst.msk [vmem:[#allocation3 + $0x60] sm:$0xff] %vm1233, %v1294
        %1311 = vst.msk [vmem:[#allocation3 + $0x68] sm:$0xff] %vm1233, %v1295
        %1312 = vst.msk [vmem:[#allocation3 + $0x70] sm:$0xff] %vm1233, %v1296
        %1313 = vst.msk [vmem:[#allocation3 + $0x78] sm:$0xff] %vm1233, %v1297
        // Predicated region
        $region65: #{tpu_custom_call.1} parent=59 // pred_check
          %p1314 = pneg %p717
        $region66: #{tpu_custom_call.1} parent=59 // pred_check_branch
          %1316 = sbr.rel (%p1314) target = $region68
        $region67: #{tpu_custom_call.1} parent=59 // pred_region
          %v1317 = vld [vmem:[#allocation2] sm:$0xff]
          %v1318 = vld [vmem:[#allocation2 + $0x8] sm:$0xff]
          %v1319 = vld [vmem:[#allocation2 + $0x10] sm:$0xff]
          %v1320 = vld [vmem:[#allocation2 + $0x18] sm:$0xff]
          %v1321 = vld [vmem:[#allocation2 + $0x20] sm:$0xff]
          %v1322 = vld [vmem:[#allocation2 + $0x28] sm:$0xff]
          %v1323 = vld [vmem:[#allocation2 + $0x30] sm:$0xff]
          %v1324 = vld [vmem:[#allocation2 + $0x38] sm:$0xff]
          %v1325 = vld [vmem:[#allocation2 + $0x40] sm:$0xff]
          %v1326 = vld [vmem:[#allocation2 + $0x48] sm:$0xff]
          %v1327 = vld [vmem:[#allocation2 + $0x50] sm:$0xff]
          %v1328 = vld [vmem:[#allocation2 + $0x58] sm:$0xff]
          %v1329 = vld [vmem:[#allocation2 + $0x60] sm:$0xff]
          %v1330 = vld [vmem:[#allocation2 + $0x68] sm:$0xff]
          %v1331 = vld [vmem:[#allocation2 + $0x70] sm:$0xff]
          %v1332 = vld [vmem:[#allocation2 + $0x78] sm:$0xff]
          %v1333 = vld [vmem:[#allocation3] sm:$0xff]
          %v1334 = vld [vmem:[#allocation3 + $0x8] sm:$0xff]
          %v1335 = vld [vmem:[#allocation3 + $0x10] sm:$0xff]
          %v1336 = vld [vmem:[#allocation3 + $0x18] sm:$0xff]
          %v1337 = vld [vmem:[#allocation3 + $0x20] sm:$0xff]
          %v1338 = vld [vmem:[#allocation3 + $0x28] sm:$0xff]
          %v1339 = vld [vmem:[#allocation3 + $0x30] sm:$0xff]
          %v1340 = vld [vmem:[#allocation3 + $0x38] sm:$0xff]
          %v1341 = vld [vmem:[#allocation3 + $0x40] sm:$0xff]
          %v1342 = vld [vmem:[#allocation3 + $0x48] sm:$0xff]
          %v1343 = vld [vmem:[#allocation3 + $0x50] sm:$0xff]
          %v1344 = vld [vmem:[#allocation3 + $0x58] sm:$0xff]
          %v1345 = vld [vmem:[#allocation3 + $0x60] sm:$0xff]
          %v1346 = vld [vmem:[#allocation3 + $0x68] sm:$0xff]
          %v1347 = vld [vmem:[#allocation3 + $0x70] sm:$0xff]
          %v1348 = vld [vmem:[#allocation3 + $0x78] sm:$0xff]
          %v1349 = vld [vmem:[%s707] sm:$0xff]
          %v1350 = vld [vmem:[%s707 + $0x8] sm:$0xff]
          %v1351 = vld [vmem:[%s707 + $0x10] sm:$0xff]
          %v1352 = vld [vmem:[%s707 + $0x18] sm:$0xff]
          %v1353 = vld [vmem:[%s707 + $0x20] sm:$0xff]
          %v1354 = vld [vmem:[%s707 + $0x28] sm:$0xff]
          %v1355 = vld [vmem:[%s707 + $0x30] sm:$0xff]
          %v1356 = vld [vmem:[%s707 + $0x38] sm:$0xff]
          %v1357 = vld [vmem:[%s707 + $0x40] sm:$0xff]
          %v1358 = vld [vmem:[%s707 + $0x48] sm:$0xff]
          %v1359 = vld [vmem:[%s707 + $0x50] sm:$0xff]
          %v1360 = vld [vmem:[%s707 + $0x58] sm:$0xff]
          %v1361 = vld [vmem:[%s707 + $0x60] sm:$0xff]
          %v1362 = vld [vmem:[%s707 + $0x68] sm:$0xff]
          %v1363 = vld [vmem:[%s707 + $0x70] sm:$0xff]
          %v1364 = vld [vmem:[%s707 + $0x78] sm:$0xff]
          %v1365 = vld [vmem:[%s713] sm:$0xff]
          %v1366 = vld [vmem:[%s713 + $0x8] sm:$0xff]
          %v1367 = vld [vmem:[%s713 + $0x10] sm:$0xff]
          %v1368 = vld [vmem:[%s713 + $0x18] sm:$0xff]
          %v1369 = vld [vmem:[%s713 + $0x20] sm:$0xff]
          %v1370 = vld [vmem:[%s713 + $0x28] sm:$0xff]
          %v1371 = vld [vmem:[%s713 + $0x30] sm:$0xff]
          %v1372 = vld [vmem:[%s713 + $0x38] sm:$0xff]
          %v1373 = vld [vmem:[%s713 + $0x40] sm:$0xff]
          %v1374 = vld [vmem:[%s713 + $0x48] sm:$0xff]
          %v1375 = vld [vmem:[%s713 + $0x50] sm:$0xff]
          %v1376 = vld [vmem:[%s713 + $0x58] sm:$0xff]
          %v1377 = vld [vmem:[%s713 + $0x60] sm:$0xff]
          %v1378 = vld [vmem:[%s713 + $0x68] sm:$0xff]
          %v1379 = vld [vmem:[%s713 + $0x70] sm:$0xff]
          %v1380 = vld [vmem:[%s713 + $0x78] sm:$0xff]
          %v1381 = vmul.f32 %v1349, %v1317
          %v1382 = vmul.f32 %v1350, %v1318
          %v1383 = vmul.f32 %v1351, %v1319
          %v1384 = vmul.f32 %v1352, %v1320
          %v1385 = vmul.f32 %v1353, %v1321
          %v1386 = vmul.f32 %v1354, %v1322
          %v1387 = vmul.f32 %v1355, %v1323
          %v1388 = vmul.f32 %v1356, %v1324
          %v1389 = vmul.f32 %v1357, %v1325
          %v1390 = vmul.f32 %v1358, %v1326
          %v1391 = vmul.f32 %v1359, %v1327
          %v1392 = vmul.f32 %v1360, %v1328
          %v1393 = vmul.f32 %v1361, %v1329
          %v1394 = vmul.f32 %v1362, %v1330
          %v1395 = vmul.f32 %v1363, %v1331
          %v1396 = vmul.f32 %v1364, %v1332
          %v1397 = vmul.f32 %v1365, %v1333
          %v1398 = vmul.f32 %v1366, %v1334
          %v1399 = vmul.f32 %v1367, %v1335
          %v1400 = vmul.f32 %v1368, %v1336
          %v1401 = vmul.f32 %v1369, %v1337
          %v1402 = vmul.f32 %v1370, %v1338
          %v1403 = vmul.f32 %v1371, %v1339
          %v1404 = vmul.f32 %v1372, %v1340
          %v1405 = vmul.f32 %v1373, %v1341
          %v1406 = vmul.f32 %v1374, %v1342
          %v1407 = vmul.f32 %v1375, %v1343
          %v1408 = vmul.f32 %v1376, %v1344
          %v1409 = vmul.f32 %v1377, %v1345
          %v1410 = vmul.f32 %v1378, %v1346
          %v1411 = vmul.f32 %v1379, %v1347
          %v1412 = vmul.f32 %v1380, %v1348
          %v1413 = vadd.f32 %v1381, %v1397
          %v1414 = vadd.f32 %v1382, %v1398
          %v1415 = vadd.f32 %v1383, %v1399
          %v1416 = vadd.f32 %v1384, %v1400
          %v1417 = vadd.f32 %v1385, %v1401
          %v1418 = vadd.f32 %v1386, %v1402
          %v1419 = vadd.f32 %v1387, %v1403
          %v1420 = vadd.f32 %v1388, %v1404
          %v1421 = vadd.f32 %v1389, %v1405
          %v1422 = vadd.f32 %v1390, %v1406
          %v1423 = vadd.f32 %v1391, %v1407
          %v1424 = vadd.f32 %v1392, %v1408
          %v1425 = vadd.f32 %v1393, %v1409
          %v1426 = vadd.f32 %v1394, %v1410
          %v1427 = vadd.f32 %v1395, %v1411
          %v1428 = vadd.f32 %v1396, %v1412
          %v1429 = vsel %vm1233, %v1413, 0.0
          %v1430 = vsel %vm1233, %v1415, 0.0
          %v1431 = vadd.f32 %v1429, %v1430
          %v1432 = vsel %vm1233, %v1417, 0.0
          %v1433 = vadd.f32 %v1431, %v1432
          %v1434 = vsel %vm1233, %v1419, 0.0
          %v1435 = vadd.f32 %v1433, %v1434
          %v1436 = vsel %vm1233, %v1421, 0.0
          %v1437 = vadd.f32 %v1435, %v1436
          %v1438 = vsel %vm1233, %v1423, 0.0
          %v1439 = vadd.f32 %v1437, %v1438
          %v1440 = vsel %vm1233, %v1425, 0.0
          %v1441 = vadd.f32 %v1439, %v1440
          %v1442 = vsel %vm1233, %v1427, 0.0
          %v1443 = vadd.f32 %v1441, %v1442
          %v1444 = vsel %vm1233, %v1414, 0.0
          %v1445 = vsel %vm1233, %v1416, 0.0
          %v1446 = vadd.f32 %v1444, %v1445
          %v1447 = vsel %vm1233, %v1418, 0.0
          %v1448 = vadd.f32 %v1446, %v1447
          %v1449 = vsel %vm1233, %v1420, 0.0
          %v1450 = vadd.f32 %v1448, %v1449
          %v1451 = vsel %vm1233, %v1422, 0.0
          %v1452 = vadd.f32 %v1450, %v1451
          %v1453 = vsel %vm1233, %v1424, 0.0
          %v1454 = vadd.f32 %v1452, %v1453
          %v1455 = vsel %vm1233, %v1426, 0.0
          %v1456 = vadd.f32 %v1454, %v1455
          %v1457 = vsel %vm1233, %v1428, 0.0
          %v1458 = vadd.f32 %v1456, %v1457
          %v1459 = vmul.f32 %v1443, 0.0625
          %v1460 = vmul.f32 %v1458, 0.0625
          %1461 = vst.msk [vmem:[%s623] sm:$0xff] %vm1233, %v1459
          %1462 = vst.msk [vmem:[%s623 + $0x8] sm:$0xff] %vm1233, %v1460
          %v1463 = vmul.f32 %v1349, %v1333
          %v1464 = vmul.f32 %v1350, %v1334
          %v1465 = vmul.f32 %v1351, %v1335
          %v1466 = vmul.f32 %v1352, %v1336
          %v1467 = vmul.f32 %v1353, %v1337
          %v1468 = vmul.f32 %v1354, %v1338
          %v1469 = vmul.f32 %v1355, %v1339
          %v1470 = vmul.f32 %v1356, %v1340
          %v1471 = vmul.f32 %v1357, %v1341
          %v1472 = vmul.f32 %v1358, %v1342
          %v1473 = vmul.f32 %v1359, %v1343
          %v1474 = vmul.f32 %v1360, %v1344
          %v1475 = vmul.f32 %v1361, %v1345
          %v1476 = vmul.f32 %v1362, %v1346
          %v1477 = vmul.f32 %v1363, %v1347
          %v1478 = vmul.f32 %v1364, %v1348
          %v1479 = vmul.f32 %v1365, %v1317
          %v1480 = vmul.f32 %v1366, %v1318
          %v1481 = vmul.f32 %v1367, %v1319
          %v1482 = vmul.f32 %v1368, %v1320
          %v1483 = vmul.f32 %v1369, %v1321
          %v1484 = vmul.f32 %v1370, %v1322
          %v1485 = vmul.f32 %v1371, %v1323
          %v1486 = vmul.f32 %v1372, %v1324
          %v1487 = vmul.f32 %v1373, %v1325
          %v1488 = vmul.f32 %v1374, %v1326
          %v1489 = vmul.f32 %v1375, %v1327
          %v1490 = vmul.f32 %v1376, %v1328
          %v1491 = vmul.f32 %v1377, %v1329
          %v1492 = vmul.f32 %v1378, %v1330
          %v1493 = vmul.f32 %v1379, %v1331
          %v1494 = vmul.f32 %v1380, %v1332
          %v1495 = vsub.f32 %v1463, %v1479
          %v1496 = vsub.f32 %v1464, %v1480
          %v1497 = vsub.f32 %v1465, %v1481
          %v1498 = vsub.f32 %v1466, %v1482
          %v1499 = vsub.f32 %v1467, %v1483
          %v1500 = vsub.f32 %v1468, %v1484
          %v1501 = vsub.f32 %v1469, %v1485
          %v1502 = vsub.f32 %v1470, %v1486
          %v1503 = vsub.f32 %v1471, %v1487
          %v1504 = vsub.f32 %v1472, %v1488
          %v1505 = vsub.f32 %v1473, %v1489
          %v1506 = vsub.f32 %v1474, %v1490
          %v1507 = vsub.f32 %v1475, %v1491
          %v1508 = vsub.f32 %v1476, %v1492
          %v1509 = vsub.f32 %v1477, %v1493
          %v1510 = vsub.f32 %v1478, %v1494
          %v1511 = vsel %vm1233, %v1495, 0.0
          %v1512 = vsel %vm1233, %v1497, 0.0
          %v1513 = vadd.f32 %v1511, %v1512
          %v1514 = vsel %vm1233, %v1499, 0.0
          %v1515 = vadd.f32 %v1513, %v1514
          %v1516 = vsel %vm1233, %v1501, 0.0
          %v1517 = vadd.f32 %v1515, %v1516
          %v1518 = vsel %vm1233, %v1503, 0.0
          %v1519 = vadd.f32 %v1517, %v1518
          %v1520 = vsel %vm1233, %v1505, 0.0
          %v1521 = vadd.f32 %v1519, %v1520
          %v1522 = vsel %vm1233, %v1507, 0.0
          %v1523 = vadd.f32 %v1521, %v1522
          %v1524 = vsel %vm1233, %v1509, 0.0
          %v1525 = vadd.f32 %v1523, %v1524
          %v1526 = vsel %vm1233, %v1496, 0.0
          %v1527 = vsel %vm1233, %v1498, 0.0
          %v1528 = vadd.f32 %v1526, %v1527
          %v1529 = vsel %vm1233, %v1500, 0.0
          %v1530 = vadd.f32 %v1528, %v1529
          %v1531 = vsel %vm1233, %v1502, 0.0
          %v1532 = vadd.f32 %v1530, %v1531
          %v1533 = vsel %vm1233, %v1504, 0.0
          %v1534 = vadd.f32 %v1532, %v1533
          %v1535 = vsel %vm1233, %v1506, 0.0
          %v1536 = vadd.f32 %v1534, %v1535
          %v1537 = vsel %vm1233, %v1508, 0.0
          %v1538 = vadd.f32 %v1536, %v1537
          %v1539 = vsel %vm1233, %v1510, 0.0
          %v1540 = vadd.f32 %v1538, %v1539
          %v1541 = vmul.f32 %v1525, 0.0625
          %v1542 = vmul.f32 %v1540, 0.0625
          %1543 = vst.msk [vmem:[%s630] sm:$0xff] %vm1233, %v1541
          %1544 = vst.msk [vmem:[%s630 + $0x8] sm:$0xff] %vm1233, %v1542
        $region68: #{tpu_custom_call.1} parent=59 // pred_fallthru
          _
        %s1545 = sand.u32 %s338, 1
        %s1546 = scalar_lea.sflag [#allocation5], %s1545
        %s1547 = sand.u32 %s338, 1
        %s1548 = smul.addr %s1547, 16
        %s1549 = scalar_lea.vmem [#allocation4], %s1548
        %s1550 = sand.u32 %s366, 1
        %s1551 = scalar_lea.sflag [#allocation7], %s1550
        %s1552 = sand.u32 %s366, 1
        %s1553 = smul.addr %s1552, 16
        %s1554 = scalar_lea.vmem [#allocation6], %s1553
        // Predicated region
        $region69: #{tpu_custom_call.1} parent=59 // pred_check
          %p1555 = pneg %p348
        $region70: #{tpu_custom_call.1} parent=59 // pred_check_branch
          %1557 = sbr.rel (%p1555) target = $region72
        $region71: #{tpu_custom_call.1} parent=59 // pred_region
          %s1558 = smul.u32 2, %s35
          %1560 = vsyncadd %s1546, 0
          %s1561 = smul.addr %s34, 2
          %s1562 = sadd.s32 %s1558, %s1561
          %s1563 = smul.addr %s1562, 8
          %s1564 = scalar_lea.hbm %s10, %s1563
          %s1565 = sshll.u32 %s1549, 4
          %s1566 = int_to_ptr.vmem [resolvable:$true] %s1565
          %s1567 = sshll.u32 %s1564, 4
          %s1568 = int_to_ptr.hbm [resolvable:$true] %s1567
          %1573 = dma.vmem_to_hbm [thread:$0]  %s1566, 256, %s1568, %s1546, 128, 128, 8
        $region72: #{tpu_custom_call.1} parent=59 // pred_fallthru
          _
        // Predicated region
        $region73: #{tpu_custom_call.1} parent=59 // pred_check
          %p1574 = pneg %p376
        $region74: #{tpu_custom_call.1} parent=59 // pred_check_branch
          %1576 = sbr.rel (%p1574) target = $region76
        $region75: #{tpu_custom_call.1} parent=59 // pred_region
          %s1577 = smul.u32 2, %s35
          %1579 = vsyncadd %s1551, 0
          %s1580 = smul.addr %s34, 2
          %s1581 = sadd.s32 %s1577, %s1580
          %s1582 = smul.addr %s1581, 8
          %s1583 = scalar_lea.hbm %s11, %s1582
          %s1584 = sshll.u32 %s1554, 4
          %s1585 = int_to_ptr.vmem [resolvable:$true] %s1584
          %s1586 = sshll.u32 %s1583, 4
          %s1587 = int_to_ptr.hbm [resolvable:$true] %s1586
          %1592 = dma.vmem_to_hbm [thread:$0]  %s1585, 256, %s1587, %s1551, 128, 128, 8
        $region76: #{tpu_custom_call.1} parent=59 // pred_fallthru
          _
      $region60: #{tpu_custom_call.1} parent=5 // pred_fallthru
        _
      %p1593 = scmp.le.s32.totalorder 2, %s24
      // Predicated region
      $region77: #{tpu_custom_call.1} parent=5 // pred_check
        %p1594 = pneg %p1593
      $region78: #{tpu_custom_call.1} parent=5 // pred_check_branch
        %1596 = sbr.rel (%p1594) target = $region80
      $region79: #{tpu_custom_call.1} parent=5 // pred_region
        %s1597 = ssub.s32 %s24, 2
        // Predicated region
        $region81: #{tpu_custom_call.1} parent=79 // pred_check
          %p1598 = pneg %p354
        $region82: #{tpu_custom_call.1} parent=79 // pred_check_branch
          %1600 = sbr.rel (%p1598) target = $region84
        $region83: #{tpu_custom_call.1} parent=79 // pred_region
          %s1601 = sand.u32 %s339, 1
          %s1602 = scalar_lea.sflag [#allocation5], %s1601
          %s1603 = sand.u32 %s339, 1
          %s1604 = smul.addr %s1603, 16
          %s1605 = scalar_lea.vmem [#allocation4], %s1604
          %1607 = dma.done %s1602, 256
        $region84: #{tpu_custom_call.1} parent=79 // pred_fallthru
          _
        // Predicated region
        $region85: #{tpu_custom_call.1} parent=79 // pred_check
          %p1608 = pneg %p382
        $region86: #{tpu_custom_call.1} parent=79 // pred_check_branch
          %1610 = sbr.rel (%p1608) target = $region88
        $region87: #{tpu_custom_call.1} parent=79 // pred_region
          %s1611 = sand.u32 %s367, 1
          %s1612 = scalar_lea.sflag [#allocation7], %s1611
          %s1613 = sand.u32 %s367, 1
          %s1614 = smul.addr %s1613, 16
          %s1615 = scalar_lea.vmem [#allocation6], %s1614
          %1617 = dma.done %s1612, 256
        $region88: #{tpu_custom_call.1} parent=79 // pred_fallthru
          _
      $region80: #{tpu_custom_call.1} parent=5 // pred_fallthru
        _
    $region6: #{tpu_custom_call.1} parent=1 // loop_footer
      %s28 = sadd.s32 1, %s24
    $region7: #{tpu_custom_call.1} parent=1 // loop_footer_branch
      %23 = sbr.rel target = $region3
    $region8: #{tpu_custom_call.1} parent=1 // loop_exit
      _
    %1618 = vsyncpa [#allocation5], 1
    %s1619 = scalar_lea.sflag [#allocation5], 1
    %1620 = vsyncpa %s1619, 1
    %1621 = vsyncpa [#allocation7], 1
    %s1622 = scalar_lea.sflag [#allocation7], 1
    %1623 = vsyncpa %s1622, 1

</llo_original>
